<compile_context>
chip_gen: v7x
topology: tpu7x:2x2x1
jax: 0.10.0
libtpu: 0.0.40
codegen_flags: <defaults>
</compile_context>

<pallas_src>
import jax
import jax.numpy as jnp
import numpy as np
from jax import lax
from jax.experimental import pallas as pl
from jax.experimental.pallas import tpu as pltpu


def _dwconv_kernel(top_ref, x_ref, bot_ref, w_ref, b_ref, col_ref, o_ref, acc_ref):
    # Shapes (leading batch dim squeezed away by the BlockSpecs):
    #   top_ref: (W, C)    input row i*TH - 1 (clamped copy of row 0 at the top edge)
    #   x_ref  : (TW, C)   the TH = TW // W input rows of this step, flattened
    #   bot_ref: (W, C)    input row (i+1)*TH (clamped at the bottom edge)
    #   w_ref  : (3, 3, C) depthwise weights (VMEM-resident across the grid)
    #   b_ref  : (1, C)    bias (resident)
    #   col_ref: (TW, 1)   int32 column-in-row index of each flattened position
    #   o_ref  : (TW, C)   output rows
    #   acc_ref: (TW, C)   f32 accumulator scratch
    i = pl.program_id(1)
    n_h = pl.num_programs(1)
    TW, _ = o_ref.shape
    W = top_ref.shape[0]
    f32 = jnp.float32

    # Invariants hoisted out of the 9-tap MAC: weight/bias casts and edge masks.
    wf = w_ref[...].astype(f32)                      # (3, 3, C)
    bf = b_ref[...].astype(f32)                      # (1, C)
    col = col_ref[...]                               # (TW, 1)
    mask_l = (col > 0).astype(f32)                   # zeroes the w == 0 column
    mask_r = (col < W - 1).astype(f32)               # zeroes the w == W-1 column

    def shifted(rows, ml, mr):
        # rows: (R, C) f32 with R a multiple of W.  Horizontal neighbours via XLU
        # sublane rolls (full-width, unmasked loads; no misaligned slices).  Any
        # value wrapped across a row / tile boundary lands exactly in the masked
        # edge column, so the masks double as the conv's horizontal zero padding.
        n = rows.shape[0]
        left = pltpu.roll(rows, 1, axis=0) * ml          # value of the w-1 neighbour
        right = pltpu.roll(rows, n - 1, axis=0) * mr     # value of the w+1 neighbour
        return left, right

    xf = x_ref[...].astype(f32)                          # (TW, C)
    xl, xr = shifted(xf, mask_l, mask_r)

    # Vertical halo rows: clamped copies are DMA'd in; zero them at the image
    # edges so they become the conv's vertical zero padding.
    topf = top_ref[...].astype(f32) * (i > 0).astype(f32)          # (W, C)
    botf = bot_ref[...].astype(f32) * (i < n_h - 1).astype(f32)    # (W, C)
    tl, tr = shifted(topf, mask_l[0:W], mask_r[0:W])
    bl, br = shifted(botf, mask_l[0:W], mask_r[0:W])

    # 9-tap depthwise MAC, f32 accumulation, bias folded into the init.
    # ky == 1: same input row.
    acc_ref[...] = bf + xl * wf[1, 0] + xf * wf[1, 1] + xr * wf[1, 2]
    # ky == 0: input row above (top halo feeds the first output row).
    acc_ref[0:W] += tl * wf[0, 0] + topf * wf[0, 1] + tr * wf[0, 2]
    if TW > W:
        acc_ref[W:TW] += (xl[0:TW - W] * wf[0, 0]
                          + xf[0:TW - W] * wf[0, 1]
                          + xr[0:TW - W] * wf[0, 2])
        # ky == 2: input row below (bottom halo feeds the last output row).
        acc_ref[0:TW - W] += (xl[W:TW] * wf[2, 0]
                              + xf[W:TW] * wf[2, 1]
                              + xr[W:TW] * wf[2, 2])
    acc_ref[TW - W:TW] += bl * wf[2, 0] + botf * wf[2, 1] + br * wf[2, 2]

    o_ref[...] = acc_ref[...].astype(o_ref.dtype)


def _vmem_budgets():
    """Generation-aware VMEM budgets: (compiler vmem limit, per-step footprint budget).

    v4/v5e/v5p/v6e TensorCores have 128 MiB of VMEM; v7x only 64 MiB per core.
    Unknown device kinds fall back to the conservative v7x numbers so the kernel
    never over-asks VMEM on a new chip.
    """
    cap = 64 * 1024 * 1024
    try:
        kind = jax.devices()[0].device_kind.lower()
        if any(tag in kind for tag in ("v4", "v5", "v6")):
            cap = 128 * 1024 * 1024
    except Exception:
        pass
    limit = min(cap * 3 // 4, 96 * 1024 * 1024)
    return limit, (limit * 2) // 3


def _choose_row_tile(H, W, C, itemsize, budget_bytes):
    """Largest divisor TH of H whose per-step VMEM footprint fits the budget.

    The footprint counts the double-buffered in/out blocks in the I/O dtype
    (4 tile-sized buffers) plus ~6 f32 tile-sized in-kernel temporaries
    (x, x_left, x_right, the accumulator scratch and transient expression
    buffers), not just the raw block bytes.  Prefers TH < H so the (B, n_h)
    grid has >= 2 steps of pipeline depth / dual-TensorCore work even at B == 1.
    """
    per_row = W * C * (4 * itemsize + 6 * 4)
    fixed = 4 * W * C * itemsize                  # the two 1-row halos, double-buffered
    divisors = [d for d in range(1, H + 1) if H % d == 0]
    fits = [d for d in divisors if d * per_row + fixed <= budget_bytes] or [1]
    th = max(fits)
    if th == H and H > 1:
        smaller = [d for d in fits if d < H]
        if smaller:
            th = max(smaller)
    return th


def dwconv_pallas(x, weight, bias, H, W):
    """x: (B, N, C) with N == H*W.  weight: (3, 3, C).  bias: (C,).  Returns (B, N, C)."""
    B, N, C = x.shape
    assert N == H * W

    # The flattened row-major layout puts W on the sublane axis, so W must be a
    # multiple of 8 for aligned blocks.  Real SAM2 stage sizes already are; if not,
    # pad W with zero columns (they reproduce the conv's own zero padding, so the
    # valid columns are unaffected) and slice them off afterwards.
    Wp = -(-W // 8) * 8
    if Wp != W:
        x_flat = jnp.pad(x.reshape(B, H, W, C),
                         ((0, 0), (0, 0), (0, Wp - W), (0, 0))).reshape(B, H * Wp, C)
    else:
        x_flat = x                      # no copy: (B, N, C) is already (H, W)-major

    itemsize = jnp.dtype(x.dtype).itemsize
    vmem_limit, tile_budget = _vmem_budgets()
    TH = _choose_row_tile(H, Wp, C, itemsize, tile_budget)
    n_h = H // TH
    TW = TH * Wp

    # Column-in-row index of every flattened position (tiny, VMEM-resident).
    col = jnp.asarray(np.arange(TW, dtype=np.int32) % Wp).reshape(TW, 1)
    b2d = bias.reshape(1, C)

    out = pl.pallas_call(
        _dwconv_kernel,
        out_shape=jax.ShapeDtypeStruct((B, H * Wp, C), x.dtype),
        grid_spec=pltpu.PrefetchScalarGridSpec(
            num_scalar_prefetch=0,
            grid=(B, n_h),
            in_specs=[
                # 1-row halo above the tile (row index clamped; zero-masked in-kernel).
                pl.BlockSpec((None, Wp, C),
                             lambda b, i: (b, jnp.maximum(i * TH - 1, 0), 0)),
                # The TH-row tile itself (flattened to TH*Wp positions).
                pl.BlockSpec((None, TW, C), lambda b, i: (b, i, 0)),
                # 1-row halo below the tile (clamped; zero-masked in-kernel).
                pl.BlockSpec((None, Wp, C),
                             lambda b, i: (b, jnp.minimum((i + 1) * TH, H - 1), 0)),
                # Weights / bias / column table: constant index_maps -> fetched once,
                # stay resident across the whole grid.
                pl.BlockSpec((3, 3, C), lambda b, i: (0, 0, 0)),
                pl.BlockSpec((1, C), lambda b, i: (0, 0)),
                pl.BlockSpec((TW, 1), lambda b, i: (0, 0)),
            ],
            out_specs=pl.BlockSpec((None, TW, C), lambda b, i: (b, i, 0)),
            scratch_shapes=[pltpu.VMEM((TW, C), jnp.float32)],
        ),
        compiler_params=pltpu.CompilerParams(
            dimension_semantics=("parallel", "parallel"),
            vmem_limit_bytes=vmem_limit),
    )(x_flat, x_flat, x_flat, weight, b2d, col)

    if Wp != W:
        out = out.reshape(B, H, Wp, C)[:, :, :W, :].reshape(B, N, C)
    return out


def _reference(x, weight, bias, H, W):
    """Pure-JAX reference using lax depthwise conv (mirrors PyTorch NCHW semantics)."""
    B, N, C = x.shape
    x_nchw = jnp.transpose(x, (0, 2, 1)).reshape(B, C, H, W)
    # PyTorch depthwise weight layout: (C_out=C, C_in/groups=1, kH, kW)
    w_oihw = jnp.transpose(weight, (2, 0, 1))[:, None, :, :]
    y = lax.conv_general_dilated(
        x_nchw, w_oihw, window_strides=(1, 1), padding=((1, 1), (1, 1)),
        dimension_numbers=("NCHW", "OIHW", "NCHW"), feature_group_count=C)
    y = y + bias[None, :, None, None]
    return jnp.transpose(y.reshape(B, C, H * W), (0, 2, 1))


if __name__ == "__main__":
    # Small shapes consistent with the module's forward: x is (B, N, C), N = H*W.
    B, C, H, W = 2, 4, 16, 16
    N = H * W

    key = jax.random.PRNGKey(0)
    kx_, kw_, kb_ = jax.random.split(key, 3)
    x = jax.random.normal(kx_, (B, N, C), dtype=jnp.float32)

    # Deterministic parameter init (Conv2d(dim, dim, 3, groups=dim, bias=True)):
    # torch weight shape (C, 1, 3, 3) is stored here as (3, 3, C); bias (C,).
    fan_in = 1 * 3 * 3
    bound = 1.0 / (fan_in ** 0.5)
    weight = jax.random.uniform(kw_, (3, 3, C), jnp.float32, -bound, bound)
    bias = jax.random.uniform(kb_, (C,), jnp.float32, -bound, bound)

    y = dwconv_pallas(x, weight, bias, H, W)
    y = jax.block_until_ready(y)

    y_ref = _reference(x, weight, bias, H, W)
    assert y.shape == (B, N, C)
    assert jnp.allclose(y, y_ref, atol=1e-5, rtol=1e-5), "mismatch vs reference"

    print("KERNEL_OK")
</pallas_src>

<mosaic_0001>
module attributes {stable_mosaic.version = 11 : i64} {
  func.func @_dwconv_kernel(%arg0: i32, %arg1: i32, %arg2: memref<1x16x4xf32, #tpu.memory_space<vmem>>, %arg3: memref<1x128x4xf32, #tpu.memory_space<vmem>>, %arg4: memref<1x16x4xf32, #tpu.memory_space<vmem>>, %arg5: memref<3x3x4xf32, #tpu.memory_space<vmem>>, %arg6: memref<1x4xf32, #tpu.memory_space<vmem>>, %arg7: memref<128x1xi32, #tpu.memory_space<vmem>>, %arg8: memref<1x128x4xf32, #tpu.memory_space<vmem>>, %arg9: memref<128x4xf32, #tpu.memory_space<vmem>>) attributes {dimension_semantics = [#tpu.dimension_semantics<parallel>, #tpu.dimension_semantics<parallel>], iteration_bounds = array<i64: 2, 2>, scalar_prefetch = 0 : i64, scratch_operands = 1 : i64, tpu.core_type = #tpu.core_type<tc>, window_params = [{transform_indices = @transform_0, window_bounds = array<i64: 1, 16, 4>}, {transform_indices = @transform_1, window_bounds = array<i64: 1, 128, 4>}, {transform_indices = @transform_2, window_bounds = array<i64: 1, 16, 4>}, {pipeline_mode = #tpu.pipeline_mode<synchronous>, transform_indices = @transform_3, window_bounds = array<i64: 3, 3, 4>}, {pipeline_mode = #tpu.pipeline_mode<synchronous>, transform_indices = @transform_4, window_bounds = array<i64: 1, 4>}, {pipeline_mode = #tpu.pipeline_mode<synchronous>, transform_indices = @transform_5, window_bounds = array<i64: 128, 1>}, {transform_indices = @transform_6, window_bounds = array<i64: 1, 128, 4>}]} {
    %c0 = arith.constant 0 : index
    %c0_0 = arith.constant 0 : index
    %c0_1 = arith.constant 0 : index
    %0 = vector.load %arg5[%c0, %c0_0, %c0_1] : memref<3x3x4xf32, #tpu.memory_space<vmem>>, vector<3x3x4xf32>
    %c0_2 = arith.constant 0 : index
    %c0_3 = arith.constant 0 : index
    %1 = vector.load %arg6[%c0_2, %c0_3] : memref<1x4xf32, #tpu.memory_space<vmem>>, vector<1x4xf32>
    %c0_4 = arith.constant 0 : index
    %c0_5 = arith.constant 0 : index
    %2 = vector.load %arg7[%c0_4, %c0_5] : memref<128x1xi32, #tpu.memory_space<vmem>>, vector<128x1xi32>
    %c0_i32 = arith.constant 0 : i32
    %3 = vector.broadcast %c0_i32 : i32 to vector<128x1xi32>
    %4 = arith.cmpi sgt, %2, %3 : vector<128x1xi32>
    %5 = arith.extui %4 : vector<128x1xi1> to vector<128x1xi32>
    %6 = arith.sitofp %5 : vector<128x1xi32> to vector<128x1xf32>
    %c15_i32 = arith.constant 15 : i32
    %7 = vector.broadcast %c15_i32 : i32 to vector<128x1xi32>
    %8 = arith.cmpi slt, %2, %7 : vector<128x1xi32>
    %9 = arith.extui %8 : vector<128x1xi1> to vector<128x1xi32>
    %10 = arith.sitofp %9 : vector<128x1xi32> to vector<128x1xf32>
    %c0_6 = arith.constant 0 : index
    %c0_7 = arith.constant 0 : index
    %c0_8 = arith.constant 0 : index
    %11 = vector.load %arg3[%c0_6, %c0_7, %c0_8] : memref<1x128x4xf32, #tpu.memory_space<vmem>>, vector<1x128x4xf32>
    %12 = vector.shape_cast %11 : vector<1x128x4xf32> to vector<128x4xf32>
    %c1_i32 = arith.constant 1 : i32
    %13 = tpu.dynamic_rotate %12 by %c1_i32 dim 0 : vector<128x4xf32>, i32 -> vector<128x4xf32>
    %14 = vector.broadcast %6 : vector<128x1xf32> to vector<128x4xf32>
    %15 = arith.mulf %13, %14 : vector<128x4xf32>
    %c127_i32 = arith.constant 127 : i32
    %16 = tpu.dynamic_rotate %12 by %c127_i32 dim 0 : vector<128x4xf32>, i32 -> vector<128x4xf32>
    %17 = vector.broadcast %10 : vector<128x1xf32> to vector<128x4xf32>
    %18 = arith.mulf %16, %17 : vector<128x4xf32>
    %c0_9 = arith.constant 0 : index
    %c0_10 = arith.constant 0 : index
    %c0_11 = arith.constant 0 : index
    %19 = vector.load %arg2[%c0_9, %c0_10, %c0_11] : memref<1x16x4xf32, #tpu.memory_space<vmem>>, vector<1x16x4xf32>
    %20 = vector.shape_cast %19 : vector<1x16x4xf32> to vector<16x4xf32>
    %c0_i32_12 = arith.constant 0 : i32
    %21 = arith.cmpi sgt, %arg1, %c0_i32_12 : i32
    %22 = arith.extui %21 : i1 to i32
    %23 = arith.sitofp %22 : i32 to f32
    %24 = vector.broadcast %23 : f32 to vector<16x4xf32>
    %25 = arith.mulf %20, %24 : vector<16x4xf32>
    %c0_13 = arith.constant 0 : index
    %c0_14 = arith.constant 0 : index
    %c0_15 = arith.constant 0 : index
    %26 = vector.load %arg4[%c0_13, %c0_14, %c0_15] : memref<1x16x4xf32, #tpu.memory_space<vmem>>, vector<1x16x4xf32>
    %27 = vector.shape_cast %26 : vector<1x16x4xf32> to vector<16x4xf32>
    %c1_i32_16 = arith.constant 1 : i32
    %28 = arith.cmpi slt, %arg1, %c1_i32_16 : i32
    %29 = arith.extui %28 : i1 to i32
    %30 = arith.sitofp %29 : i32 to f32
    %31 = vector.broadcast %30 : f32 to vector<16x4xf32>
    %32 = arith.mulf %27, %31 : vector<16x4xf32>
    %33 = vector.extract_strided_slice %6 {offsets = [0, 0], sizes = [16, 1], strides = [1, 1]} : vector<128x1xf32> to vector<16x1xf32>
    %34 = vector.extract_strided_slice %10 {offsets = [0, 0], sizes = [16, 1], strides = [1, 1]} : vector<128x1xf32> to vector<16x1xf32>
    %c1_i32_17 = arith.constant 1 : i32
    %35 = tpu.dynamic_rotate %25 by %c1_i32_17 dim 0 : vector<16x4xf32>, i32 -> vector<16x4xf32>
    %36 = vector.broadcast %33 : vector<16x1xf32> to vector<16x4xf32>
    %37 = arith.mulf %35, %36 : vector<16x4xf32>
    %c15_i32_18 = arith.constant 15 : i32
    %38 = tpu.dynamic_rotate %25 by %c15_i32_18 dim 0 : vector<16x4xf32>, i32 -> vector<16x4xf32>
    %39 = vector.broadcast %34 : vector<16x1xf32> to vector<16x4xf32>
    %40 = arith.mulf %38, %39 : vector<16x4xf32>
    %41 = vector.extract_strided_slice %6 {offsets = [0, 0], sizes = [16, 1], strides = [1, 1]} : vector<128x1xf32> to vector<16x1xf32>
    %42 = vector.extract_strided_slice %10 {offsets = [0, 0], sizes = [16, 1], strides = [1, 1]} : vector<128x1xf32> to vector<16x1xf32>
    %c1_i32_19 = arith.constant 1 : i32
    %43 = tpu.dynamic_rotate %32 by %c1_i32_19 dim 0 : vector<16x4xf32>, i32 -> vector<16x4xf32>
    %44 = vector.broadcast %41 : vector<16x1xf32> to vector<16x4xf32>
    %45 = arith.mulf %43, %44 : vector<16x4xf32>
    %c15_i32_20 = arith.constant 15 : i32
    %46 = tpu.dynamic_rotate %32 by %c15_i32_20 dim 0 : vector<16x4xf32>, i32 -> vector<16x4xf32>
    %47 = vector.broadcast %42 : vector<16x1xf32> to vector<16x4xf32>
    %48 = arith.mulf %46, %47 : vector<16x4xf32>
    %49 = vector.extract_strided_slice %0 {offsets = [1, 0, 0], sizes = [1, 1, 4], strides = [1, 1, 1]} : vector<3x3x4xf32> to vector<1x1x4xf32>
    %50 = vector.shape_cast %49 : vector<1x1x4xf32> to vector<4xf32>
    %51 = vector.shape_cast %50 : vector<4xf32> to vector<1x4xf32>
    %52 = vector.broadcast %51 : vector<1x4xf32> to vector<128x4xf32>
    %53 = arith.mulf %15, %52 : vector<128x4xf32>
    %54 = vector.broadcast %1 : vector<1x4xf32> to vector<128x4xf32>
    %55 = arith.addf %54, %53 : vector<128x4xf32>
    %56 = vector.extract_strided_slice %0 {offsets = [1, 1, 0], sizes = [1, 1, 4], strides = [1, 1, 1]} : vector<3x3x4xf32> to vector<1x1x4xf32>
    %57 = vector.shape_cast %56 : vector<1x1x4xf32> to vector<4xf32>
    %58 = vector.shape_cast %57 : vector<4xf32> to vector<1x4xf32>
    %59 = vector.broadcast %58 : vector<1x4xf32> to vector<128x4xf32>
    %60 = arith.mulf %12, %59 : vector<128x4xf32>
    %61 = arith.addf %55, %60 : vector<128x4xf32>
    %62 = vector.extract_strided_slice %0 {offsets = [1, 2, 0], sizes = [1, 1, 4], strides = [1, 1, 1]} : vector<3x3x4xf32> to vector<1x1x4xf32>
    %63 = vector.shape_cast %62 : vector<1x1x4xf32> to vector<4xf32>
    %64 = vector.shape_cast %63 : vector<4xf32> to vector<1x4xf32>
    %65 = vector.broadcast %64 : vector<1x4xf32> to vector<128x4xf32>
    %66 = arith.mulf %18, %65 : vector<128x4xf32>
    %67 = arith.addf %61, %66 : vector<128x4xf32>
    %c0_21 = arith.constant 0 : index
    %c0_22 = arith.constant 0 : index
    %68 = vector.load %arg9[%c0_21, %c0_22] : memref<128x4xf32, #tpu.memory_space<vmem>>, vector<128x4xf32>
    tpu.vector_store %arg9[%c0_21, %c0_22], %67 {strides = array<i32>} : memref<128x4xf32, #tpu.memory_space<vmem>>, vector<128x4xf32>,
    %c0_23 = arith.constant 0 : index
    %c0_24 = arith.constant 0 : index
    %69 = vector.load %arg9[%c0_23, %c0_24] : memref<128x4xf32, #tpu.memory_space<vmem>>, vector<16x4xf32>
    %70 = vector.extract_strided_slice %0 {offsets = [0, 0, 0], sizes = [1, 1, 4], strides = [1, 1, 1]} : vector<3x3x4xf32> to vector<1x1x4xf32>
    %71 = vector.shape_cast %70 : vector<1x1x4xf32> to vector<4xf32>
    %72 = vector.shape_cast %71 : vector<4xf32> to vector<1x4xf32>
    %73 = vector.broadcast %72 : vector<1x4xf32> to vector<16x4xf32>
    %74 = arith.mulf %37, %73 : vector<16x4xf32>
    %75 = vector.extract_strided_slice %0 {offsets = [0, 1, 0], sizes = [1, 1, 4], strides = [1, 1, 1]} : vector<3x3x4xf32> to vector<1x1x4xf32>
    %76 = vector.shape_cast %75 : vector<1x1x4xf32> to vector<4xf32>
    %77 = vector.shape_cast %76 : vector<4xf32> to vector<1x4xf32>
    %78 = vector.broadcast %77 : vector<1x4xf32> to vector<16x4xf32>
    %79 = arith.mulf %25, %78 : vector<16x4xf32>
    %80 = arith.addf %74, %79 : vector<16x4xf32>
    %81 = vector.extract_strided_slice %0 {offsets = [0, 2, 0], sizes = [1, 1, 4], strides = [1, 1, 1]} : vector<3x3x4xf32> to vector<1x1x4xf32>
    %82 = vector.shape_cast %81 : vector<1x1x4xf32> to vector<4xf32>
    %83 = vector.shape_cast %82 : vector<4xf32> to vector<1x4xf32>
    %84 = vector.broadcast %83 : vector<1x4xf32> to vector<16x4xf32>
    %85 = arith.mulf %40, %84 : vector<16x4xf32>
    %86 = arith.addf %80, %85 : vector<16x4xf32>
    %87 = arith.addf %69, %86 : vector<16x4xf32>
    %c0_25 = arith.constant 0 : index
    %c0_26 = arith.constant 0 : index
    %88 = vector.load %arg9[%c0_25, %c0_26] : memref<128x4xf32, #tpu.memory_space<vmem>>, vector<16x4xf32>
    tpu.vector_store %arg9[%c0_25, %c0_26], %87 {strides = array<i32>} : memref<128x4xf32, #tpu.memory_space<vmem>>, vector<16x4xf32>,
    %c16 = arith.constant 16 : index
    %c0_27 = arith.constant 0 : index
    %89 = vector.load %arg9[%c16, %c0_27] : memref<128x4xf32, #tpu.memory_space<vmem>>, vector<112x4xf32>
    %90 = vector.extract_strided_slice %15 {offsets = [0, 0], sizes = [112, 4], strides = [1, 1]} : vector<128x4xf32> to vector<112x4xf32>
    %91 = vector.extract_strided_slice %0 {offsets = [0, 0, 0], sizes = [1, 1, 4], strides = [1, 1, 1]} : vector<3x3x4xf32> to vector<1x1x4xf32>
    %92 = vector.shape_cast %91 : vector<1x1x4xf32> to vector<4xf32>
    %93 = vector.shape_cast %92 : vector<4xf32> to vector<1x4xf32>
    %94 = vector.broadcast %93 : vector<1x4xf32> to vector<112x4xf32>
    %95 = arith.mulf %90, %94 : vector<112x4xf32>
    %96 = vector.extract_strided_slice %12 {offsets = [0, 0], sizes = [112, 4], strides = [1, 1]} : vector<128x4xf32> to vector<112x4xf32>
    %97 = vector.extract_strided_slice %0 {offsets = [0, 1, 0], sizes = [1, 1, 4], strides = [1, 1, 1]} : vector<3x3x4xf32> to vector<1x1x4xf32>
    %98 = vector.shape_cast %97 : vector<1x1x4xf32> to vector<4xf32>
    %99 = vector.shape_cast %98 : vector<4xf32> to vector<1x4xf32>
    %100 = vector.broadcast %99 : vector<1x4xf32> to vector<112x4xf32>
    %101 = arith.mulf %96, %100 : vector<112x4xf32>
    %102 = arith.addf %95, %101 : vector<112x4xf32>
    %103 = vector.extract_strided_slice %18 {offsets = [0, 0], sizes = [112, 4], strides = [1, 1]} : vector<128x4xf32> to vector<112x4xf32>
    %104 = vector.extract_strided_slice %0 {offsets = [0, 2, 0], sizes = [1, 1, 4], strides = [1, 1, 1]} : vector<3x3x4xf32> to vector<1x1x4xf32>
    %105 = vector.shape_cast %104 : vector<1x1x4xf32> to vector<4xf32>
    %106 = vector.shape_cast %105 : vector<4xf32> to vector<1x4xf32>
    %107 = vector.broadcast %106 : vector<1x4xf32> to vector<112x4xf32>
    %108 = arith.mulf %103, %107 : vector<112x4xf32>
    %109 = arith.addf %102, %108 : vector<112x4xf32>
    %110 = arith.addf %89, %109 : vector<112x4xf32>
    %c16_28 = arith.constant 16 : index
    %c0_29 = arith.constant 0 : index
    %111 = vector.load %arg9[%c16_28, %c0_29] : memref<128x4xf32, #tpu.memory_space<vmem>>, vector<112x4xf32>
    tpu.vector_store %arg9[%c16_28, %c0_29], %110 {strides = array<i32>} : memref<128x4xf32, #tpu.memory_space<vmem>>, vector<112x4xf32>,
    %c0_30 = arith.constant 0 : index
    %c0_31 = arith.constant 0 : index
    %112 = vector.load %arg9[%c0_30, %c0_31] : memref<128x4xf32, #tpu.memory_space<vmem>>, vector<112x4xf32>
    %113 = vector.extract_strided_slice %15 {offsets = [16, 0], sizes = [112, 4], strides = [1, 1]} : vector<128x4xf32> to vector<112x4xf32>
    %114 = vector.extract_strided_slice %0 {offsets = [2, 0, 0], sizes = [1, 1, 4], strides = [1, 1, 1]} : vector<3x3x4xf32> to vector<1x1x4xf32>
    %115 = vector.shape_cast %114 : vector<1x1x4xf32> to vector<4xf32>
    %116 = vector.shape_cast %115 : vector<4xf32> to vector<1x4xf32>
    %117 = vector.broadcast %116 : vector<1x4xf32> to vector<112x4xf32>
    %118 = arith.mulf %113, %117 : vector<112x4xf32>
    %119 = vector.extract_strided_slice %12 {offsets = [16, 0], sizes = [112, 4], strides = [1, 1]} : vector<128x4xf32> to vector<112x4xf32>
    %120 = vector.extract_strided_slice %0 {offsets = [2, 1, 0], sizes = [1, 1, 4], strides = [1, 1, 1]} : vector<3x3x4xf32> to vector<1x1x4xf32>
    %121 = vector.shape_cast %120 : vector<1x1x4xf32> to vector<4xf32>
    %122 = vector.shape_cast %121 : vector<4xf32> to vector<1x4xf32>
    %123 = vector.broadcast %122 : vector<1x4xf32> to vector<112x4xf32>
    %124 = arith.mulf %119, %123 : vector<112x4xf32>
    %125 = arith.addf %118, %124 : vector<112x4xf32>
    %126 = vector.extract_strided_slice %18 {offsets = [16, 0], sizes = [112, 4], strides = [1, 1]} : vector<128x4xf32> to vector<112x4xf32>
    %127 = vector.extract_strided_slice %0 {offsets = [2, 2, 0], sizes = [1, 1, 4], strides = [1, 1, 1]} : vector<3x3x4xf32> to vector<1x1x4xf32>
    %128 = vector.shape_cast %127 : vector<1x1x4xf32> to vector<4xf32>
    %129 = vector.shape_cast %128 : vector<4xf32> to vector<1x4xf32>
    %130 = vector.broadcast %129 : vector<1x4xf32> to vector<112x4xf32>
    %131 = arith.mulf %126, %130 : vector<112x4xf32>
    %132 = arith.addf %125, %131 : vector<112x4xf32>
    %133 = arith.addf %112, %132 : vector<112x4xf32>
    %c0_32 = arith.constant 0 : index
    %c0_33 = arith.constant 0 : index
    %134 = vector.load %arg9[%c0_32, %c0_33] : memref<128x4xf32, #tpu.memory_space<vmem>>, vector<112x4xf32>
    tpu.vector_store %arg9[%c0_32, %c0_33], %133 {strides = array<i32>} : memref<128x4xf32, #tpu.memory_space<vmem>>, vector<112x4xf32>,
    %c112 = arith.constant 112 : index
    %c0_34 = arith.constant 0 : index
    %135 = vector.load %arg9[%c112, %c0_34] : memref<128x4xf32, #tpu.memory_space<vmem>>, vector<16x4xf32>
    %136 = vector.extract_strided_slice %0 {offsets = [2, 0, 0], sizes = [1, 1, 4], strides = [1, 1, 1]} : vector<3x3x4xf32> to vector<1x1x4xf32>
    %137 = vector.shape_cast %136 : vector<1x1x4xf32> to vector<4xf32>
    %138 = vector.shape_cast %137 : vector<4xf32> to vector<1x4xf32>
    %139 = vector.broadcast %138 : vector<1x4xf32> to vector<16x4xf32>
    %140 = arith.mulf %45, %139 : vector<16x4xf32>
    %141 = vector.extract_strided_slice %0 {offsets = [2, 1, 0], sizes = [1, 1, 4], strides = [1, 1, 1]} : vector<3x3x4xf32> to vector<1x1x4xf32>
    %142 = vector.shape_cast %141 : vector<1x1x4xf32> to vector<4xf32>
    %143 = vector.shape_cast %142 : vector<4xf32> to vector<1x4xf32>
    %144 = vector.broadcast %143 : vector<1x4xf32> to vector<16x4xf32>
    %145 = arith.mulf %32, %144 : vector<16x4xf32>
    %146 = arith.addf %140, %145 : vector<16x4xf32>
    %147 = vector.extract_strided_slice %0 {offsets = [2, 2, 0], sizes = [1, 1, 4], strides = [1, 1, 1]} : vector<3x3x4xf32> to vector<1x1x4xf32>
    %148 = vector.shape_cast %147 : vector<1x1x4xf32> to vector<4xf32>
    %149 = vector.shape_cast %148 : vector<4xf32> to vector<1x4xf32>
    %150 = vector.broadcast %149 : vector<1x4xf32> to vector<16x4xf32>
    %151 = arith.mulf %48, %150 : vector<16x4xf32>
    %152 = arith.addf %146, %151 : vector<16x4xf32>
    %153 = arith.addf %135, %152 : vector<16x4xf32>
    %c112_35 = arith.constant 112 : index
    %c0_36 = arith.constant 0 : index
    %154 = vector.load %arg9[%c112_35, %c0_36] : memref<128x4xf32, #tpu.memory_space<vmem>>, vector<16x4xf32>
    tpu.vector_store %arg9[%c112_35, %c0_36], %153 {strides = array<i32>} : memref<128x4xf32, #tpu.memory_space<vmem>>, vector<16x4xf32>,
    %c0_37 = arith.constant 0 : index
    %c0_38 = arith.constant 0 : index
    %155 = vector.load %arg9[%c0_37, %c0_38] : memref<128x4xf32, #tpu.memory_space<vmem>>, vector<128x4xf32>
    %c0_39 = arith.constant 0 : index
    %c0_40 = arith.constant 0 : index
    %c0_41 = arith.constant 0 : index
    %156 = vector.load %arg8[%c0_39, %c0_40, %c0_41] : memref<1x128x4xf32, #tpu.memory_space<vmem>>, vector<1x128x4xf32>
    %157 = vector.shape_cast %156 : vector<1x128x4xf32> to vector<128x4xf32>
    %158 = vector.shape_cast %155 : vector<128x4xf32> to vector<1x128x4xf32>
    tpu.vector_store %arg8[%c0_39, %c0_40, %c0_41], %158 {strides = array<i32>} : memref<1x128x4xf32, #tpu.memory_space<vmem>>, vector<1x128x4xf32>,
    return
  }
  func.func @transform_0(%arg0: i32, %arg1: i32) -> (i32, i32, i32) {
    %c8_i32 = arith.constant 8 : i32
    %0 = arith.muli %arg1, %c8_i32 : i32
    %c1_i32 = arith.constant 1 : i32
    %1 = arith.subi %0, %c1_i32 : i32
    %c0_i32 = arith.constant 0 : i32
    %2 = arith.maxsi %1, %c0_i32 : i32
    %c0_i32_0 = arith.constant 0 : i32
    %c0_i32_1 = arith.constant 0 : i32
    return %arg0, %2, %c0_i32_0 : i32, i32, i32
  }
  func.func @transform_1(%arg0: i32, %arg1: i32) -> (i32, i32, i32) {
    %c0_i32 = arith.constant 0 : i32
    %c0_i32_0 = arith.constant 0 : i32
    return %arg0, %arg1, %c0_i32 : i32, i32, i32
  }
  func.func @transform_2(%arg0: i32, %arg1: i32) -> (i32, i32, i32) {
    %c1_i32 = arith.constant 1 : i32
    %0 = arith.addi %arg1, %c1_i32 : i32
    %c8_i32 = arith.constant 8 : i32
    %1 = arith.muli %0, %c8_i32 : i32
    %c15_i32 = arith.constant 15 : i32
    %2 = arith.minsi %1, %c15_i32 : i32
    %c0_i32 = arith.constant 0 : i32
    %c0_i32_0 = arith.constant 0 : i32
    return %arg0, %2, %c0_i32 : i32, i32, i32
  }
  func.func @transform_3(%arg0: i32, %arg1: i32) -> (i32, i32, i32) {
    %c0_i32 = arith.constant 0 : i32
    %c0_i32_0 = arith.constant 0 : i32
    %c0_i32_1 = arith.constant 0 : i32
    %c0_i32_2 = arith.constant 0 : i32
    return %c0_i32, %c0_i32_0, %c0_i32_1 : i32, i32, i32
  }
  func.func @transform_4(%arg0: i32, %arg1: i32) -> (i32, i32) {
    %c0_i32 = arith.constant 0 : i32
    %c0_i32_0 = arith.constant 0 : i32
    %c0_i32_1 = arith.constant 0 : i32
    return %c0_i32, %c0_i32_0 : i32, i32
  }
  func.func @transform_5(%arg0: i32, %arg1: i32) -> (i32, i32) {
    %c0_i32 = arith.constant 0 : i32
    %c0_i32_0 = arith.constant 0 : i32
    %c0_i32_1 = arith.constant 0 : i32
    return %c0_i32, %c0_i32_0 : i32, i32
  }
  func.func @transform_6(%arg0: i32, %arg1: i32) -> (i32, i32, i32) {
    %c0_i32 = arith.constant 0 : i32
    %c0_i32_0 = arith.constant 0 : i32
    return %arg0, %arg1, %c0_i32 : i32, i32, i32
  }
}

</mosaic_0001>

<llo_original>
// kernel: tpu_custom_call.1
$region0: #{tpu_custom_call.1}
  #allocation0 [shape = 'u32[]', space=smem, size = 0x4, offset = 0x4, fixed_abs, tag = 'smem constant byte address 0x4 - core index']
  #allocation1 [shape = 'u32[144,128]{1,0:T(1,128)}', space=vmem, size = 0x12000, scoped, tag = 'internal scratch']
  #allocation2 [shape = 'f32[128,4]{1,0:T(8,128)}', space=vmem, size = 0x10000, scoped, tag = 'scratch operand']
  %s0 = inlined_call_operand.vmem [shape: f32[2,256,4], index: 0, kind: input, shape index: {}]
  %s1 = inlined_call_operand.vmem [shape: f32[2,256,4], index: 1, kind: input, shape index: {}]
  %s2 = inlined_call_operand.vmem [shape: f32[2,256,4], index: 2, kind: input, shape index: {}]
  %s3 = inlined_call_operand.vmem [shape: f32[3,3,4], index: 3, kind: input, shape index: {}]
  %s4 = inlined_call_operand.vmem [shape: f32[1,4], index: 4, kind: input, shape index: {}]
  %s5 = inlined_call_operand.vmem [shape: s32[128,1], index: 5, kind: input, shape index: {}]
  %s6 = inlined_call_operand.vmem [shape: f32[2,256,4], index: 6, kind: output, shape index: {}]
  %s7 = sld [smem:[#allocation0]]
  $region57: #{tpu_custom_call.1} parent=0
    _
  %s9 = ssub.s32 1, %s7
  %s10 = scalar_select 0, %s9, %s7
  loop: start=0, step=1, limit=6
  $region2: #{tpu_custom_call.1} parent=0 // loop_pre_header
    _
  $region3: #{tpu_custom_call.1} parent=0 // loop_header
    %s12 = sphi 0, %s16
    %p13 = scmp.ge.s32.totalorder %s12, 6
    %s19 = sphi 0, %s31
    %s20 = sphi 0, %s27
    %s21 = sphi 0, %s19
    %s22 = sphi 0, %s20
    %s23 = sphi 0, %s21
    %s24 = sphi 0, %s22
    %s44 = sphi 0, %s46
    %s47 = sphi 0, %s44
    %s48 = sphi 0, %s47
    %s64 = sphi 0, %s48
    %s72 = sphi 0, %s74
    %s75 = sphi 0, %s72
    %s76 = sphi 0, %s75
    %s92 = sphi 0, %s76
    %s108 = sphi 0, %s110
    %s111 = sphi 0, %s108
    %s112 = sphi 0, %s111
    %s128 = sphi 0, %s112
    %s132 = sphi 0, %s132
    %s134 = sphi 0, %s132
    %s135 = sphi 0, %s134
    %s149 = sphi 0, %s135
    %s153 = sphi 0, %s153
    %s155 = sphi 0, %s153
    %s156 = sphi 0, %s155
    %s170 = sphi 0, %s156
    %s174 = sphi 0, %s174
    %s176 = sphi 0, %s174
    %s177 = sphi 0, %s176
    %s191 = sphi 0, %s177
    %s199 = sphi 0, %s201
    %s202 = sphi 0, %s199
    %s203 = sphi 0, %s202
    %s219 = sphi 0, %s203
  $region4: #{tpu_custom_call.1} parent=0 // loop_header_branch
    %15 = sbr.rel (%p13) target = $region8
  $region5: #{tpu_custom_call.1} parent=0 // loop_body
    %s17 = ssub.s32 %s12, 1
    %s18 = ssub.s32 %s12, 2
    %s25 = sadd.s32 1, %s20
    %p26 = scmp.ge.s32.totalorder %s25, 2
    %s27 = scalar_select %p26, 0, %s25
    %s28 = sadd.s32 1, %s19
    %s29 = scalar_select %p26, %s28, %s19
    %p30 = scmp.ge.s32.totalorder %s29, 2
    %s31 = scalar_select %p30, 0, %s29
    %s32 = smul.u32 %s20, 8
    %s33 = ssub.s32 %s32, 1
    %p34 = scmp.gt.s32.totalorder %s33, 0
    %s35 = scalar_select %p34, %s33, 0
    %s36 = smul.u32 %s27, 8
    %s37 = ssub.s32 %s36, 1
    %p38 = scmp.gt.s32.totalorder %s37, 0
    %s39 = scalar_select %p38, %s37, 0
    %s40 = ssub.s32 %s19, %s31
    %s41 = ssub.s32 %s35, %s39
    %s42 = sor.u32 %s40, %s41
    %p43 = scmp.eq.s32.totalorder %s42, 0
    %s45 = sadd.s32 %s44, 1
    %s46 = scalar_select %p43, %s44, %s45
    %p49 = pneg %p43
    %p50 = scmp.eq.s32.totalorder %s12, 3
    %p51 = por %p49, %p50
    %p52 = scmp.ne.s32.totalorder %s44, %s47
    %p53 = scmp.eq.s32.totalorder %s12, 0
    %p54 = por %p52, %p53
    %p55 = scmp.ne.s32.totalorder %s44, %s47
    %p56 = scmp.eq.s32.totalorder %s17, 3
    %p57 = por %p55, %p56
    %p58 = scmp.ne.s32.totalorder %s47, %s48
    %p59 = scmp.eq.s32.totalorder %s17, 0
    %p60 = por %p58, %p59
    %p61 = scmp.ne.s32.totalorder %s47, %s48
    %p62 = scmp.eq.s32.totalorder %s18, 3
    %p63 = por %p61, %p62
    %p65 = scmp.ne.s32.totalorder %s48, %s64
    %p66 = scmp.eq.s32.totalorder %s18, 0
    %p67 = por %p65, %p66
    %s68 = ssub.s32 %s19, %s31
    %s69 = ssub.s32 %s20, %s27
    %s70 = sor.u32 %s68, %s69
    %p71 = scmp.eq.s32.totalorder %s70, 0
    %s73 = sadd.s32 %s72, 1
    %s74 = scalar_select %p71, %s72, %s73
    %p77 = pneg %p71
    %p78 = scmp.eq.s32.totalorder %s12, 3
    %p79 = por %p77, %p78
    %p80 = scmp.ne.s32.totalorder %s72, %s75
    %p81 = scmp.eq.s32.totalorder %s12, 0
    %p82 = por %p80, %p81
    %p83 = scmp.ne.s32.totalorder %s72, %s75
    %p84 = scmp.eq.s32.totalorder %s17, 3
    %p85 = por %p83, %p84
    %p86 = scmp.ne.s32.totalorder %s75, %s76
    %p87 = scmp.eq.s32.totalorder %s17, 0
    %p88 = por %p86, %p87
    %p89 = scmp.ne.s32.totalorder %s75, %s76
    %p90 = scmp.eq.s32.totalorder %s18, 3
    %p91 = por %p89, %p90
    %p93 = scmp.ne.s32.totalorder %s76, %s92
    %p94 = scmp.eq.s32.totalorder %s18, 0
    %p95 = por %p93, %p94
    %s96 = sadd.s32 %s20, 1
    %s97 = smul.u32 %s96, 8
    %p98 = scmp.lt.s32.totalorder %s97, 15
    %s99 = scalar_select %p98, %s97, 15
    %s100 = sadd.s32 %s27, 1
    %s101 = smul.u32 %s100, 8
    %p102 = scmp.lt.s32.totalorder %s101, 15
    %s103 = scalar_select %p102, %s101, 15
    %s104 = ssub.s32 %s19, %s31
    %s105 = ssub.s32 %s99, %s103
    %s106 = sor.u32 %s104, %s105
    %p107 = scmp.eq.s32.totalorder %s106, 0
    %s109 = sadd.s32 %s108, 1
    %s110 = scalar_select %p107, %s108, %s109
    %p113 = pneg %p107
    %p114 = scmp.eq.s32.totalorder %s12, 3
    %p115 = por %p113, %p114
    %p116 = scmp.ne.s32.totalorder %s108, %s111
    %p117 = scmp.eq.s32.totalorder %s12, 0
    %p118 = por %p116, %p117
    %p119 = scmp.ne.s32.totalorder %s108, %s111
    %p120 = scmp.eq.s32.totalorder %s17, 3
    %p121 = por %p119, %p120
    %p122 = scmp.ne.s32.totalorder %s111, %s112
    %p123 = scmp.eq.s32.totalorder %s17, 0
    %p124 = por %p122, %p123
    %p125 = scmp.ne.s32.totalorder %s111, %s112
    %p126 = scmp.eq.s32.totalorder %s18, 3
    %p127 = por %p125, %p126
    %p129 = scmp.ne.s32.totalorder %s112, %s128
    %p130 = scmp.eq.s32.totalorder %s18, 0
    %p131 = por %p129, %p130
    %s133 = sadd.s32 %s132, 1
    %p136 = scmp.eq.s32.totalorder %s12, 3
    %p137 = scmp.ne.s32.totalorder %s132, %s134
    %p138 = scmp.eq.s32.totalorder %s12, 0
    %p139 = por %p137, %p138
    %p140 = scmp.ne.s32.totalorder %s132, %s134
    %p141 = scmp.eq.s32.totalorder %s17, 3
    %p142 = por %p140, %p141
    %p143 = scmp.ne.s32.totalorder %s134, %s135
    %p144 = scmp.eq.s32.totalorder %s17, 0
    %p145 = por %p143, %p144
    %p146 = scmp.ne.s32.totalorder %s134, %s135
    %p147 = scmp.eq.s32.totalorder %s18, 3
    %p148 = por %p146, %p147
    %p150 = scmp.ne.s32.totalorder %s135, %s149
    %p151 = scmp.eq.s32.totalorder %s18, 0
    %p152 = por %p150, %p151
    %s154 = sadd.s32 %s153, 1
    %p157 = scmp.eq.s32.totalorder %s12, 3
    %p158 = scmp.ne.s32.totalorder %s153, %s155
    %p159 = scmp.eq.s32.totalorder %s12, 0
    %p160 = por %p158, %p159
    %p161 = scmp.ne.s32.totalorder %s153, %s155
    %p162 = scmp.eq.s32.totalorder %s17, 3
    %p163 = por %p161, %p162
    %p164 = scmp.ne.s32.totalorder %s155, %s156
    %p165 = scmp.eq.s32.totalorder %s17, 0
    %p166 = por %p164, %p165
    %p167 = scmp.ne.s32.totalorder %s155, %s156
    %p168 = scmp.eq.s32.totalorder %s18, 3
    %p169 = por %p167, %p168
    %p171 = scmp.ne.s32.totalorder %s156, %s170
    %p172 = scmp.eq.s32.totalorder %s18, 0
    %p173 = por %p171, %p172
    %s175 = sadd.s32 %s174, 1
    %p178 = scmp.eq.s32.totalorder %s12, 3
    %p179 = scmp.ne.s32.totalorder %s174, %s176
    %p180 = scmp.eq.s32.totalorder %s12, 0
    %p181 = por %p179, %p180
    %p182 = scmp.ne.s32.totalorder %s174, %s176
    %p183 = scmp.eq.s32.totalorder %s17, 3
    %p184 = por %p182, %p183
    %p185 = scmp.ne.s32.totalorder %s176, %s177
    %p186 = scmp.eq.s32.totalorder %s17, 0
    %p187 = por %p185, %p186
    %p188 = scmp.ne.s32.totalorder %s176, %s177
    %p189 = scmp.eq.s32.totalorder %s18, 3
    %p190 = por %p188, %p189
    %p192 = scmp.ne.s32.totalorder %s177, %s191
    %p193 = scmp.eq.s32.totalorder %s18, 0
    %p194 = por %p192, %p193
    %s195 = ssub.s32 %s19, %s31
    %s196 = ssub.s32 %s20, %s27
    %s197 = sor.u32 %s195, %s196
    %p198 = scmp.eq.s32.totalorder %s197, 0
    %s200 = sadd.s32 %s199, 1
    %s201 = scalar_select %p198, %s199, %s200
    %p204 = pneg %p198
    %p205 = scmp.eq.s32.totalorder %s12, 3
    %p206 = por %p204, %p205
    %p207 = scmp.ne.s32.totalorder %s199, %s202
    %p208 = scmp.eq.s32.totalorder %s12, 0
    %p209 = por %p207, %p208
    %p210 = scmp.ne.s32.totalorder %s199, %s202
    %p211 = scmp.eq.s32.totalorder %s17, 3
    %p212 = por %p210, %p211
    %p213 = scmp.ne.s32.totalorder %s202, %s203
    %p214 = scmp.eq.s32.totalorder %s17, 0
    %p215 = por %p213, %p214
    %p216 = scmp.ne.s32.totalorder %s202, %s203
    %p217 = scmp.eq.s32.totalorder %s18, 3
    %p218 = por %p216, %p217
    %p220 = scmp.ne.s32.totalorder %s203, %s219
    %p221 = scmp.eq.s32.totalorder %s18, 0
    %p222 = por %p220, %p221
    %p223 = scmp.le.s32.totalorder 1, %s12
    %p224 = scmp.lt.s32.totalorder %s12, 5
    %p225 = pnand %p223, %p224
    %p226 = pneg %p225
    // Predicated region
    $region9: #{tpu_custom_call.1} parent=5 // pred_check
      _
    $region10: #{tpu_custom_call.1} parent=5 // pred_check_branch
      %228 = sbr.rel (%p225) target = $region12
    $region11: #{tpu_custom_call.1} parent=5 // pred_region
      %s229 = ssub.s32 %s12, 1
      // Predicated region
      $region13: #{tpu_custom_call.1} parent=11 // pred_check
        %p230 = pneg %p145
      $region14: #{tpu_custom_call.1} parent=11 // pred_check_branch
        %232 = sbr.rel (%p230) target = $region16
      $region15: #{tpu_custom_call.1} parent=11 // pred_region
        _
      $region16: #{tpu_custom_call.1} parent=11 // pred_fallthru
        _
      // Predicated region
      $region17: #{tpu_custom_call.1} parent=11 // pred_check
        %p233 = pneg %p166
      $region18: #{tpu_custom_call.1} parent=11 // pred_check_branch
        %235 = sbr.rel (%p233) target = $region20
      $region19: #{tpu_custom_call.1} parent=11 // pred_region
        _
      $region20: #{tpu_custom_call.1} parent=11 // pred_fallthru
        _
      // Predicated region
      $region21: #{tpu_custom_call.1} parent=11 // pred_check
        %p236 = pneg %p187
      $region22: #{tpu_custom_call.1} parent=11 // pred_check_branch
        %238 = sbr.rel (%p236) target = $region24
      $region23: #{tpu_custom_call.1} parent=11 // pred_region
        _
      $region24: #{tpu_custom_call.1} parent=11 // pred_fallthru
        _
    $region12: #{tpu_custom_call.1} parent=5 // pred_fallthru
      _
    %p239 = scmp.lt.s32.totalorder %s12, 4
    // Predicated region
    $region25: #{tpu_custom_call.1} parent=5 // pred_check
      %p240 = pneg %p239
    $region26: #{tpu_custom_call.1} parent=5 // pred_check_branch
      %242 = sbr.rel (%p240) target = $region28
    $region27: #{tpu_custom_call.1} parent=5 // pred_region
      // Predicated region
      $region29: #{tpu_custom_call.1} parent=27 // pred_check
        %p243 = pneg %p54
      $region30: #{tpu_custom_call.1} parent=27 // pred_check_branch
        %245 = sbr.rel (%p243) target = $region32
      $region31: #{tpu_custom_call.1} parent=27 // pred_region
        %s246 = smul.u32 %s20, 8
        %s247 = ssub.s32 %s246, 1
        %p248 = scmp.gt.s32.totalorder %s247, 0
        %s249 = scalar_select %p248, %s247, 0
        %s250 = smul.u32 2, %s249
        %p251 = scmp.lt.s32.totalorder %s19, 1
        %s252 = scalar_select %p251, %s19, 1
        %p253 = scmp.lt.s32.totalorder %s250, 31
        %s254 = scalar_select %p253, %s250, 31
        %s255 = smul.addr %s252, 32
        %s256 = sadd.s32 %s254, %s255
        %s257 = smul.addr %s256, 8
        %s258 = scalar_lea.vmem %s0, %s257
        %s259 = smul.u32 %s20, 8
        %s260 = ssub.s32 %s259, 1
        %p261 = scmp.gt.s32.totalorder %s260, 0
        %s262 = scalar_select %p261, %s260, 0
        %s263 = smul.u32 2, %s262
      $region32: #{tpu_custom_call.1} parent=27 // pred_fallthru
        _
      // Predicated region
      $region33: #{tpu_custom_call.1} parent=27 // pred_check
        %p264 = pneg %p82
      $region34: #{tpu_custom_call.1} parent=27 // pred_check_branch
        %266 = sbr.rel (%p264) target = $region36
      $region35: #{tpu_custom_call.1} parent=27 // pred_region
        %s267 = smul.u32 16, %s20
        %p268 = scmp.lt.s32.totalorder %s19, 1
        %s269 = scalar_select %p268, %s19, 1
        %p270 = scmp.lt.s32.totalorder %s267, 31
        %s271 = scalar_select %p270, %s267, 31
        %s272 = smul.addr %s269, 32
        %s273 = sadd.s32 %s271, %s272
        %s274 = smul.addr %s273, 8
        %s275 = scalar_lea.vmem %s1, %s274
        %s276 = smul.u32 16, %s20
      $region36: #{tpu_custom_call.1} parent=27 // pred_fallthru
        _
      // Predicated region
      $region37: #{tpu_custom_call.1} parent=27 // pred_check
        %p277 = pneg %p118
      $region38: #{tpu_custom_call.1} parent=27 // pred_check_branch
        %279 = sbr.rel (%p277) target = $region40
      $region39: #{tpu_custom_call.1} parent=27 // pred_region
        %s280 = sadd.s32 %s20, 1
        %s281 = smul.u32 %s280, 8
        %p282 = scmp.lt.s32.totalorder %s281, 15
        %s283 = scalar_select %p282, %s281, 15
        %s284 = smul.u32 2, %s283
        %p285 = scmp.lt.s32.totalorder %s19, 1
        %s286 = scalar_select %p285, %s19, 1
        %p287 = scmp.lt.s32.totalorder %s284, 31
        %s288 = scalar_select %p287, %s284, 31
        %s289 = smul.addr %s286, 32
        %s290 = sadd.s32 %s288, %s289
        %s291 = smul.addr %s290, 8
        %s292 = scalar_lea.vmem %s2, %s291
        %s293 = sadd.s32 %s20, 1
        %s294 = smul.u32 %s293, 8
        %p295 = scmp.lt.s32.totalorder %s294, 15
        %s296 = scalar_select %p295, %s294, 15
        %s297 = smul.u32 2, %s296
      $region40: #{tpu_custom_call.1} parent=27 // pred_fallthru
        _
    $region28: #{tpu_custom_call.1} parent=5 // pred_fallthru
      _
    %p298 = scmp.le.s32.totalorder 1, %s12
    %p299 = scmp.lt.s32.totalorder %s12, 5
    %p300 = pnand %p298, %p299
    %p301 = pneg %p300
    // Predicated region
    $region41: #{tpu_custom_call.1} parent=5 // pred_check
      _
    $region42: #{tpu_custom_call.1} parent=5 // pred_check_branch
      %303 = sbr.rel (%p300) target = $region44
    $region43: #{tpu_custom_call.1} parent=5 // pred_region
      %s304 = ssub.s32 %s12, 1
      %s305 = smul.u32 %s22, 8
      %s306 = ssub.s32 %s305, 1
      %p307 = scmp.gt.s32.totalorder %s306, 0
      %s308 = scalar_select %p307, %s306, 0
      %s309 = smul.u32 2, %s308
      %p310 = scmp.lt.s32.totalorder %s21, 1
      %s311 = scalar_select %p310, %s21, 1
      %p312 = scmp.lt.s32.totalorder %s309, 31
      %s313 = scalar_select %p312, %s309, 31
      %s314 = smul.addr %s311, 32
      %s315 = sadd.s32 %s313, %s314
      %s316 = smul.addr %s315, 8
      %s317 = scalar_lea.vmem %s0, %s316
      %p318 = pneg %p60
      %p319 = pneg %p57
      %s320 = smul.u32 16, %s22
      %p321 = scmp.lt.s32.totalorder %s21, 1
      %s322 = scalar_select %p321, %s21, 1
      %p323 = scmp.lt.s32.totalorder %s320, 31
      %s324 = scalar_select %p323, %s320, 31
      %s325 = smul.addr %s322, 32
      %s326 = sadd.s32 %s324, %s325
      %s327 = smul.addr %s326, 8
      %s328 = scalar_lea.vmem %s1, %s327
      %p329 = pneg %p88
      %p330 = pneg %p85
      %s331 = sadd.s32 %s22, 1
      %s332 = smul.u32 %s331, 8
      %p333 = scmp.lt.s32.totalorder %s332, 15
      %s334 = scalar_select %p333, %s332, 15
      %s335 = smul.u32 2, %s334
      %p336 = scmp.lt.s32.totalorder %s21, 1
      %s337 = scalar_select %p336, %s21, 1
      %p338 = scmp.lt.s32.totalorder %s335, 31
      %s339 = scalar_select %p338, %s335, 31
      %s340 = smul.addr %s337, 32
      %s341 = sadd.s32 %s339, %s340
      %s342 = smul.addr %s341, 8
      %s343 = scalar_lea.vmem %s2, %s342
      %p344 = pneg %p124
      %p345 = pneg %p121
      %p346 = pneg %p145
      %p347 = pneg %p142
      %p348 = pneg %p166
      %p349 = pneg %p163
      %p350 = pneg %p187
      %p351 = pneg %p184
      %p352 = pneg %p215
      %p353 = pneg %p212
      %s354 = smul.u32 16, %s22
      %p355 = scmp.lt.s32.totalorder %s21, 1
      %s356 = scalar_select %p355, %s21, 1
      %p357 = scmp.lt.s32.totalorder %s354, 31
      %s358 = scalar_select %p357, %s354, 31
      %s359 = smul.addr %s356, 32
      %s360 = sadd.s32 %s358, %s359
      %s361 = smul.addr %s360, 8
      %s362 = scalar_lea.vmem %s6, %s361
      %s363 = smul.u32 %s22, 8
      %s364 = ssub.s32 %s363, 1
      %p365 = scmp.gt.s32.totalorder %s364, 0
      %s366 = scalar_select %p365, %s364, 0
      %s367 = smul.u32 2, %s366
      %p368 = scmp.lt.s32.totalorder %s21, 1
      %s369 = scalar_select %p368, %s21, 1
      %p370 = scmp.lt.s32.totalorder %s367, 31
      %s371 = scalar_select %p370, %s367, 31
      %s372 = smul.addr %s369, 32
      %s373 = sadd.s32 %s371, %s372
      %s374 = smul.addr %s373, 8
      %s375 = scalar_lea.vmem %s0, %s374
      %s376 = smul.u32 %s22, 8
      %s377 = ssub.s32 %s376, 1
      %p378 = scmp.gt.s32.totalorder %s377, 0
      %s379 = scalar_select %p378, %s377, 0
      %s380 = smul.u32 2, %s379
      %s381 = smul.u32 16, %s22
      %p382 = scmp.lt.s32.totalorder %s21, 1
      %s383 = scalar_select %p382, %s21, 1
      %p384 = scmp.lt.s32.totalorder %s381, 31
      %s385 = scalar_select %p384, %s381, 31
      %s386 = smul.addr %s383, 32
      %s387 = sadd.s32 %s385, %s386
      %s388 = smul.addr %s387, 8
      %s389 = scalar_lea.vmem %s1, %s388
      %s390 = smul.u32 16, %s22
      %s391 = sadd.s32 %s22, 1
      %s392 = smul.u32 %s391, 8
      %p393 = scmp.lt.s32.totalorder %s392, 15
      %s394 = scalar_select %p393, %s392, 15
      %s395 = smul.u32 2, %s394
      %p396 = scmp.lt.s32.totalorder %s21, 1
      %s397 = scalar_select %p396, %s21, 1
      %p398 = scmp.lt.s32.totalorder %s395, 31
      %s399 = scalar_select %p398, %s395, 31
      %s400 = smul.addr %s397, 32
      %s401 = sadd.s32 %s399, %s400
      %s402 = smul.addr %s401, 8
      %s403 = scalar_lea.vmem %s2, %s402
      %s404 = sadd.s32 %s22, 1
      %s405 = smul.u32 %s404, 8
      %p406 = scmp.lt.s32.totalorder %s405, 15
      %s407 = scalar_select %p406, %s405, 15
      %s408 = smul.u32 2, %s407
      %s409 = smul.u32 16, %s22
      %p410 = scmp.lt.s32.totalorder %s21, 1
      %s411 = scalar_select %p410, %s21, 1
      %p412 = scmp.lt.s32.totalorder %s409, 31
      %s413 = scalar_select %p412, %s409, 31
      %s414 = smul.addr %s411, 32
      %s415 = sadd.s32 %s413, %s414
      %s416 = smul.addr %s415, 8
      %s417 = scalar_lea.vmem %s6, %s416
      %s418 = smul.u32 16, %s22
      %v419 = vld [vmem:[%s3] sm:$0x7]
      %v420 = vld [vmem:[%s3 + $0x4] sm:$0x7]
      %v421 = vld [vmem:[%s3 + $0x8] sm:$0x7]
      %v422 = vld [vmem:[%s4] sm:$0x1]
      %v423 = vld [vmem:[%s5] sm:$0xff]
      %v424 = vld [vmem:[%s5 + $0x8] sm:$0xff]
      %v425 = vld [vmem:[%s5 + $0x10] sm:$0xff]
      %v426 = vld [vmem:[%s5 + $0x18] sm:$0xff]
      %v427 = vld [vmem:[%s5 + $0x20] sm:$0xff]
      %v428 = vld [vmem:[%s5 + $0x28] sm:$0xff]
      %v429 = vld [vmem:[%s5 + $0x30] sm:$0xff]
      %v430 = vld [vmem:[%s5 + $0x38] sm:$0xff]
      %v431 = vld [vmem:[%s5 + $0x40] sm:$0xff]
      %v432 = vld [vmem:[%s5 + $0x48] sm:$0xff]
      %v433 = vld [vmem:[%s5 + $0x50] sm:$0xff]
      %v434 = vld [vmem:[%s5 + $0x58] sm:$0xff]
      %v435 = vld [vmem:[%s5 + $0x60] sm:$0xff]
      %v436 = vld [vmem:[%s5 + $0x68] sm:$0xff]
      %v437 = vld [vmem:[%s5 + $0x70] sm:$0xff]
      %v438 = vld [vmem:[%s5 + $0x78] sm:$0xff]
      %vm439 = vcmp.gt.s32.totalorder %v423, 0
      %vm440 = vcmp.gt.s32.totalorder %v424, 0
      %vm441 = vcmp.gt.s32.totalorder %v425, 0
      %vm442 = vcmp.gt.s32.totalorder %v426, 0
      %vm443 = vcmp.gt.s32.totalorder %v427, 0
      %vm444 = vcmp.gt.s32.totalorder %v428, 0
      %vm445 = vcmp.gt.s32.totalorder %v429, 0
      %vm446 = vcmp.gt.s32.totalorder %v430, 0
      %vm447 = vcmp.gt.s32.totalorder %v431, 0
      %vm448 = vcmp.gt.s32.totalorder %v432, 0
      %vm449 = vcmp.gt.s32.totalorder %v433, 0
      %vm450 = vcmp.gt.s32.totalorder %v434, 0
      %vm451 = vcmp.gt.s32.totalorder %v435, 0
      %vm452 = vcmp.gt.s32.totalorder %v436, 0
      %vm453 = vcmp.gt.s32.totalorder %v437, 0
      %vm454 = vcmp.gt.s32.totalorder %v438, 0
      %v455 = vsel %vm439, 1, 0
      %v456 = vsel %vm440, 1, 0
      %v457 = vsel %vm441, 1, 0
      %v458 = vsel %vm442, 1, 0
      %v459 = vsel %vm443, 1, 0
      %v460 = vsel %vm444, 1, 0
      %v461 = vsel %vm445, 1, 0
      %v462 = vsel %vm446, 1, 0
      %v463 = vsel %vm447, 1, 0
      %v464 = vsel %vm448, 1, 0
      %v465 = vsel %vm449, 1, 0
      %v466 = vsel %vm450, 1, 0
      %v467 = vsel %vm451, 1, 0
      %v468 = vsel %vm452, 1, 0
      %v469 = vsel %vm453, 1, 0
      %v470 = vsel %vm454, 1, 0
      %v471 = vcvt.s32.f32 %v455
      %v472 = vcvt.s32.f32 %v456
      %v473 = vcvt.s32.f32 %v457
      %v474 = vcvt.s32.f32 %v458
      %v475 = vcvt.s32.f32 %v459
      %v476 = vcvt.s32.f32 %v460
      %v477 = vcvt.s32.f32 %v461
      %v478 = vcvt.s32.f32 %v462
      %v479 = vcvt.s32.f32 %v463
      %v480 = vcvt.s32.f32 %v464
      %v481 = vcvt.s32.f32 %v465
      %v482 = vcvt.s32.f32 %v466
      %v483 = vcvt.s32.f32 %v467
      %v484 = vcvt.s32.f32 %v468
      %v485 = vcvt.s32.f32 %v469
      %v486 = vcvt.s32.f32 %v470
      %vm487 = vcmp.lt.s32.totalorder %v423, 15
      %vm488 = vcmp.lt.s32.totalorder %v424, 15
      %vm489 = vcmp.lt.s32.totalorder %v425, 15
      %vm490 = vcmp.lt.s32.totalorder %v426, 15
      %vm491 = vcmp.lt.s32.totalorder %v427, 15
      %vm492 = vcmp.lt.s32.totalorder %v428, 15
      %vm493 = vcmp.lt.s32.totalorder %v429, 15
      %vm494 = vcmp.lt.s32.totalorder %v430, 15
      %vm495 = vcmp.lt.s32.totalorder %v431, 15
      %vm496 = vcmp.lt.s32.totalorder %v432, 15
      %vm497 = vcmp.lt.s32.totalorder %v433, 15
      %vm498 = vcmp.lt.s32.totalorder %v434, 15
      %vm499 = vcmp.lt.s32.totalorder %v435, 15
      %vm500 = vcmp.lt.s32.totalorder %v436, 15
      %vm501 = vcmp.lt.s32.totalorder %v437, 15
      %vm502 = vcmp.lt.s32.totalorder %v438, 15
      %v503 = vsel %vm487, 1, 0
      %v504 = vsel %vm488, 1, 0
      %v505 = vsel %vm489, 1, 0
      %v506 = vsel %vm490, 1, 0
      %v507 = vsel %vm491, 1, 0
      %v508 = vsel %vm492, 1, 0
      %v509 = vsel %vm493, 1, 0
      %v510 = vsel %vm494, 1, 0
      %v511 = vsel %vm495, 1, 0
      %v512 = vsel %vm496, 1, 0
      %v513 = vsel %vm497, 1, 0
      %v514 = vsel %vm498, 1, 0
      %v515 = vsel %vm499, 1, 0
      %v516 = vsel %vm500, 1, 0
      %v517 = vsel %vm501, 1, 0
      %v518 = vsel %vm502, 1, 0
      %v519 = vcvt.s32.f32 %v503
      %v520 = vcvt.s32.f32 %v504
      %v521 = vcvt.s32.f32 %v505
      %v522 = vcvt.s32.f32 %v506
      %v523 = vcvt.s32.f32 %v507
      %v524 = vcvt.s32.f32 %v508
      %v525 = vcvt.s32.f32 %v509
      %v526 = vcvt.s32.f32 %v510
      %v527 = vcvt.s32.f32 %v511
      %v528 = vcvt.s32.f32 %v512
      %v529 = vcvt.s32.f32 %v513
      %v530 = vcvt.s32.f32 %v514
      %v531 = vcvt.s32.f32 %v515
      %v532 = vcvt.s32.f32 %v516
      %v533 = vcvt.s32.f32 %v517
      %v534 = vcvt.s32.f32 %v518
      %v535 = vld [vmem:[%s389] sm:$0xff]
      %v536 = vld [vmem:[%s389 + $0x8] sm:$0xff]
      %v537 = vld [vmem:[%s389 + $0x10] sm:$0xff]
      %v538 = vld [vmem:[%s389 + $0x18] sm:$0xff]
      %v539 = vld [vmem:[%s389 + $0x20] sm:$0xff]
      %v540 = vld [vmem:[%s389 + $0x28] sm:$0xff]
      %v541 = vld [vmem:[%s389 + $0x30] sm:$0xff]
      %v542 = vld [vmem:[%s389 + $0x38] sm:$0xff]
      %v543 = vld [vmem:[%s389 + $0x40] sm:$0xff]
      %v544 = vld [vmem:[%s389 + $0x48] sm:$0xff]
      %v545 = vld [vmem:[%s389 + $0x50] sm:$0xff]
      %v546 = vld [vmem:[%s389 + $0x58] sm:$0xff]
      %v547 = vld [vmem:[%s389 + $0x60] sm:$0xff]
      %v548 = vld [vmem:[%s389 + $0x68] sm:$0xff]
      %v549 = vld [vmem:[%s389 + $0x70] sm:$0xff]
      %v550 = vld [vmem:[%s389 + $0x78] sm:$0xff]
      %v551 = vrot.slane %v535, 7
      %v552 = vrot.slane %v536, 7
      %v553 = vrot.slane %v537, 7
      %v554 = vrot.slane %v538, 7
      %v555 = vrot.slane %v539, 7
      %v556 = vrot.slane %v540, 7
      %v557 = vrot.slane %v541, 7
      %v558 = vrot.slane %v542, 7
      %v559 = vrot.slane %v543, 7
      %v560 = vrot.slane %v544, 7
      %v561 = vrot.slane %v545, 7
      %v562 = vrot.slane %v546, 7
      %v563 = vrot.slane %v547, 7
      %v564 = vrot.slane %v548, 7
      %v565 = vrot.slane %v549, 7
      %v566 = vrot.slane %v550, 7
      %v567 = vlaneseq
      %v568 = vshrl.u32 %v567, 7
      %vm569 = vcmp.lt.s32.totalorder %v568, 1
      %v570 = vsel %vm569, %v565, %v566
      %v571 = vsel %vm569, %v564, %v565
      %v572 = vsel %vm569, %v563, %v564
      %v573 = vsel %vm569, %v562, %v563
      %v574 = vsel %vm569, %v561, %v562
      %v575 = vsel %vm569, %v560, %v561
      %v576 = vsel %vm569, %v559, %v560
      %v577 = vsel %vm569, %v558, %v559
      %v578 = vsel %vm569, %v557, %v558
      %v579 = vsel %vm569, %v556, %v557
      %v580 = vsel %vm569, %v555, %v556
      %v581 = vsel %vm569, %v554, %v555
      %v582 = vsel %vm569, %v553, %v554
      %v583 = vsel %vm569, %v552, %v553
      %v584 = vsel %vm569, %v551, %v552
      %v585 = vsel %vm569, %v566, %v551
      %587 = vset.pattern.permute.xlu0 0
      %588 = vperm.xlu0 %587, %v471
      %v589 = vpop.permute.xlu0 %588
      %592 = vset.pattern.permute.xlu0 0
      %593 = vperm.xlu0 %592, %v472
      %v594 = vpop.permute.xlu0 %593
      %597 = vset.pattern.permute.xlu0 0
      %598 = vperm.xlu0 %597, %v473
      %v599 = vpop.permute.xlu0 %598
      %602 = vset.pattern.permute.xlu0 0
      %603 = vperm.xlu0 %602, %v474
      %v604 = vpop.permute.xlu0 %603
      %607 = vset.pattern.permute.xlu0 0
      %608 = vperm.xlu0 %607, %v475
      %v609 = vpop.permute.xlu0 %608
      %612 = vset.pattern.permute.xlu0 0
      %613 = vperm.xlu0 %612, %v476
      %v614 = vpop.permute.xlu0 %613
      %617 = vset.pattern.permute.xlu0 0
      %618 = vperm.xlu0 %617, %v477
      %v619 = vpop.permute.xlu0 %618
      %622 = vset.pattern.permute.xlu0 0
      %623 = vperm.xlu0 %622, %v478
      %v624 = vpop.permute.xlu0 %623
      %627 = vset.pattern.permute.xlu0 0
      %628 = vperm.xlu0 %627, %v479
      %v629 = vpop.permute.xlu0 %628
      %632 = vset.pattern.permute.xlu0 0
      %633 = vperm.xlu0 %632, %v480
      %v634 = vpop.permute.xlu0 %633
      %637 = vset.pattern.permute.xlu0 0
      %638 = vperm.xlu0 %637, %v481
      %v639 = vpop.permute.xlu0 %638
      %642 = vset.pattern.permute.xlu0 0
      %643 = vperm.xlu0 %642, %v482
      %v644 = vpop.permute.xlu0 %643
      %647 = vset.pattern.permute.xlu0 0
      %648 = vperm.xlu0 %647, %v483
      %v649 = vpop.permute.xlu0 %648
      %652 = vset.pattern.permute.xlu0 0
      %653 = vperm.xlu0 %652, %v484
      %v654 = vpop.permute.xlu0 %653
      %657 = vset.pattern.permute.xlu0 0
      %658 = vperm.xlu0 %657, %v485
      %v659 = vpop.permute.xlu0 %658
      %662 = vset.pattern.permute.xlu0 0
      %663 = vperm.xlu0 %662, %v486
      %v664 = vpop.permute.xlu0 %663
      %v666 = vmul.f32 %v585, %v589
      %v667 = vmul.f32 %v584, %v594
      %v668 = vmul.f32 %v583, %v599
      %v669 = vmul.f32 %v582, %v604
      %v670 = vmul.f32 %v581, %v609
      %v671 = vmul.f32 %v580, %v614
      %v672 = vmul.f32 %v579, %v619
      %v673 = vmul.f32 %v578, %v624
      %v674 = vmul.f32 %v577, %v629
      %v675 = vmul.f32 %v576, %v634
      %v676 = vmul.f32 %v575, %v639
      %v677 = vmul.f32 %v574, %v644
      %v678 = vmul.f32 %v573, %v649
      %v679 = vmul.f32 %v572, %v654
      %v680 = vmul.f32 %v571, %v659
      %v681 = vmul.f32 %v570, %v664
      %v682 = vrot.slane %v535, 1
      %v683 = vrot.slane %v536, 1
      %v684 = vrot.slane %v537, 1
      %v685 = vrot.slane %v538, 1
      %v686 = vrot.slane %v539, 1
      %v687 = vrot.slane %v540, 1
      %v688 = vrot.slane %v541, 1
      %v689 = vrot.slane %v542, 1
      %v690 = vrot.slane %v543, 1
      %v691 = vrot.slane %v544, 1
      %v692 = vrot.slane %v545, 1
      %v693 = vrot.slane %v546, 1
      %v694 = vrot.slane %v547, 1
      %v695 = vrot.slane %v548, 1
      %v696 = vrot.slane %v549, 1
      %v697 = vrot.slane %v550, 1
      %vm698 = vcmp.lt.s32.totalorder %v568, 7
      %v699 = vsel %vm698, %v696, %v697
      %v700 = vsel %vm698, %v695, %v696
      %v701 = vsel %vm698, %v694, %v695
      %v702 = vsel %vm698, %v693, %v694
      %v703 = vsel %vm698, %v692, %v693
      %v704 = vsel %vm698, %v691, %v692
      %v705 = vsel %vm698, %v690, %v691
      %v706 = vsel %vm698, %v689, %v690
      %v707 = vsel %vm698, %v688, %v689
      %v708 = vsel %vm698, %v687, %v688
      %v709 = vsel %vm698, %v686, %v687
      %v710 = vsel %vm698, %v685, %v686
      %v711 = vsel %vm698, %v684, %v685
      %v712 = vsel %vm698, %v683, %v684
      %v713 = vsel %vm698, %v682, %v683
      %v714 = vsel %vm698, %v697, %v682
      %716 = vset.pattern.permute.xlu0 0
      %717 = vperm.xlu0 %716, %v519
      %v718 = vpop.permute.xlu0 %717
      %721 = vset.pattern.permute.xlu0 0
      %722 = vperm.xlu0 %721, %v520
      %v723 = vpop.permute.xlu0 %722
      %726 = vset.pattern.permute.xlu0 0
      %727 = vperm.xlu0 %726, %v521
      %v728 = vpop.permute.xlu0 %727
      %731 = vset.pattern.permute.xlu0 0
      %732 = vperm.xlu0 %731, %v522
      %v733 = vpop.permute.xlu0 %732
      %736 = vset.pattern.permute.xlu0 0
      %737 = vperm.xlu0 %736, %v523
      %v738 = vpop.permute.xlu0 %737
      %741 = vset.pattern.permute.xlu0 0
      %742 = vperm.xlu0 %741, %v524
      %v743 = vpop.permute.xlu0 %742
      %746 = vset.pattern.permute.xlu0 0
      %747 = vperm.xlu0 %746, %v525
      %v748 = vpop.permute.xlu0 %747
      %751 = vset.pattern.permute.xlu0 0
      %752 = vperm.xlu0 %751, %v526
      %v753 = vpop.permute.xlu0 %752
      %756 = vset.pattern.permute.xlu0 0
      %757 = vperm.xlu0 %756, %v527
      %v758 = vpop.permute.xlu0 %757
      %761 = vset.pattern.permute.xlu0 0
      %762 = vperm.xlu0 %761, %v528
      %v763 = vpop.permute.xlu0 %762
      %766 = vset.pattern.permute.xlu0 0
      %767 = vperm.xlu0 %766, %v529
      %v768 = vpop.permute.xlu0 %767
      %771 = vset.pattern.permute.xlu0 0
      %772 = vperm.xlu0 %771, %v530
      %v773 = vpop.permute.xlu0 %772
      %776 = vset.pattern.permute.xlu0 0
      %777 = vperm.xlu0 %776, %v531
      %v778 = vpop.permute.xlu0 %777
      %781 = vset.pattern.permute.xlu0 0
      %782 = vperm.xlu0 %781, %v532
      %v783 = vpop.permute.xlu0 %782
      %786 = vset.pattern.permute.xlu0 0
      %787 = vperm.xlu0 %786, %v533
      %v788 = vpop.permute.xlu0 %787
      %791 = vset.pattern.permute.xlu0 0
      %792 = vperm.xlu0 %791, %v534
      %v793 = vpop.permute.xlu0 %792
      %v795 = vmul.f32 %v713, %v718
      %v796 = vmul.f32 %v712, %v723
      %v797 = vmul.f32 %v711, %v728
      %v798 = vmul.f32 %v710, %v733
      %v799 = vmul.f32 %v709, %v738
      %v800 = vmul.f32 %v708, %v743
      %v801 = vmul.f32 %v707, %v748
      %v802 = vmul.f32 %v706, %v753
      %v803 = vmul.f32 %v705, %v758
      %v804 = vmul.f32 %v704, %v763
      %v805 = vmul.f32 %v703, %v768
      %v806 = vmul.f32 %v702, %v773
      %v807 = vmul.f32 %v701, %v778
      %v808 = vmul.f32 %v700, %v783
      %v809 = vmul.f32 %v699, %v788
      %v810 = vmul.f32 %v714, %v793
      %v811 = vld [vmem:[%s375] sm:$0xff]
      %v812 = vld [vmem:[%s375 + $0x8] sm:$0xff]
      %p813 = scmp.gt.s32.totalorder %s22, 0
      %s814 = scalar_select %p813, 1, 0
      %s815 = scvt.s32.f32 %s814
      %v816 = vstv %s815
      %v817 = vmul.f32 %v811, %v816
      %v818 = vmul.f32 %v812, %v816
      %v819 = vld [vmem:[%s403] sm:$0xff]
      %v820 = vld [vmem:[%s403 + $0x8] sm:$0xff]
      %p821 = scmp.lt.s32.totalorder %s22, 1
      %s822 = scalar_select %p821, 1, 0
      %s823 = scvt.s32.f32 %s822
      %v824 = vstv %s823
      %v825 = vmul.f32 %v819, %v824
      %v826 = vmul.f32 %v820, %v824
      %v827 = vrot.slane %v817, 7
      %v828 = vrot.slane %v818, 7
      %v829 = vsel %vm569, %v827, %v828
      %v830 = vsel %vm569, %v828, %v827
      %v831 = vmul.f32 %v830, %v589
      %v832 = vmul.f32 %v829, %v594
      %v833 = vrot.slane %v817, 1
      %v834 = vrot.slane %v818, 1
      %v835 = vsel %vm698, %v833, %v834
      %v836 = vsel %vm698, %v834, %v833
      %v837 = vmul.f32 %v835, %v718
      %v838 = vmul.f32 %v836, %v723
      %v839 = vrot.slane %v825, 7
      %v840 = vrot.slane %v826, 7
      %v841 = vsel %vm569, %v839, %v840
      %v842 = vsel %vm569, %v840, %v839
      %v843 = vmul.f32 %v842, %v589
      %v844 = vmul.f32 %v841, %v594
      %v845 = vrot.slane %v825, 1
      %v846 = vrot.slane %v826, 1
      %v847 = vsel %vm698, %v845, %v846
      %v848 = vsel %vm698, %v846, %v845
      %v849 = vmul.f32 %v847, %v718
      %v850 = vmul.f32 %v848, %v723
      %v851 = vlaneseq
      %v852 = vshrl.u32 %v851, 7
      %v853 = vsub.s32 0, %v852
      %v854 = vrot.slane %v420, %v853
      %v855 = vmul.f32 %v666, %v854
      %v856 = vmul.f32 %v667, %v854
      %v857 = vmul.f32 %v668, %v854
      %v858 = vmul.f32 %v669, %v854
      %v859 = vmul.f32 %v670, %v854
      %v860 = vmul.f32 %v671, %v854
      %v861 = vmul.f32 %v672, %v854
      %v862 = vmul.f32 %v673, %v854
      %v863 = vmul.f32 %v674, %v854
      %v864 = vmul.f32 %v675, %v854
      %v865 = vmul.f32 %v676, %v854
      %v866 = vmul.f32 %v677, %v854
      %v867 = vmul.f32 %v678, %v854
      %v868 = vmul.f32 %v679, %v854
      %v869 = vmul.f32 %v680, %v854
      %v870 = vmul.f32 %v681, %v854
      %v872 = vlaneseq
      %v873 = vshrl.u32 %v872, 7
      %v874 = vsub.s32 0, %v873
      %v875 = vrot.slane %v422, %v874
      %v877 = vadd.f32 %v875, %v855
      %v878 = vadd.f32 %v875, %v856
      %v879 = vadd.f32 %v875, %v857
      %v880 = vadd.f32 %v875, %v858
      %v881 = vadd.f32 %v875, %v859
      %v882 = vadd.f32 %v875, %v860
      %v883 = vadd.f32 %v875, %v861
      %v884 = vadd.f32 %v875, %v862
      %v885 = vadd.f32 %v875, %v863
      %v886 = vadd.f32 %v875, %v864
      %v887 = vadd.f32 %v875, %v865
      %v888 = vadd.f32 %v875, %v866
      %v889 = vadd.f32 %v875, %v867
      %v890 = vadd.f32 %v875, %v868
      %v891 = vadd.f32 %v875, %v869
      %v892 = vadd.f32 %v875, %v870
      %v893 = vlaneseq
      %v894 = vshrl.u32 %v893, 7
      %v895 = vsub.s32 1, %v894
      %v896 = vrot.slane %v420, %v895
      %v897 = vmul.f32 %v535, %v896
      %v898 = vmul.f32 %v536, %v896
      %v899 = vmul.f32 %v537, %v896
      %v900 = vmul.f32 %v538, %v896
      %v901 = vmul.f32 %v539, %v896
      %v902 = vmul.f32 %v540, %v896
      %v903 = vmul.f32 %v541, %v896
      %v904 = vmul.f32 %v542, %v896
      %v905 = vmul.f32 %v543, %v896
      %v906 = vmul.f32 %v544, %v896
      %v907 = vmul.f32 %v545, %v896
      %v908 = vmul.f32 %v546, %v896
      %v909 = vmul.f32 %v547, %v896
      %v910 = vmul.f32 %v548, %v896
      %v911 = vmul.f32 %v549, %v896
      %v912 = vmul.f32 %v550, %v896
      %v913 = vadd.f32 %v877, %v897
      %v914 = vadd.f32 %v878, %v898
      %v915 = vadd.f32 %v879, %v899
      %v916 = vadd.f32 %v880, %v900
      %v917 = vadd.f32 %v881, %v901
      %v918 = vadd.f32 %v882, %v902
      %v919 = vadd.f32 %v883, %v903
      %v920 = vadd.f32 %v884, %v904
      %v921 = vadd.f32 %v885, %v905
      %v922 = vadd.f32 %v886, %v906
      %v923 = vadd.f32 %v887, %v907
      %v924 = vadd.f32 %v888, %v908
      %v925 = vadd.f32 %v889, %v909
      %v926 = vadd.f32 %v890, %v910
      %v927 = vadd.f32 %v891, %v911
      %v928 = vadd.f32 %v892, %v912
      %v929 = vlaneseq
      %v930 = vshrl.u32 %v929, 7
      %v931 = vsub.s32 2, %v930
      %v932 = vrot.slane %v420, %v931
      %v933 = vmul.f32 %v795, %v932
      %v934 = vmul.f32 %v796, %v932
      %v935 = vmul.f32 %v797, %v932
      %v936 = vmul.f32 %v798, %v932
      %v937 = vmul.f32 %v799, %v932
      %v938 = vmul.f32 %v800, %v932
      %v939 = vmul.f32 %v801, %v932
      %v940 = vmul.f32 %v802, %v932
      %v941 = vmul.f32 %v803, %v932
      %v942 = vmul.f32 %v804, %v932
      %v943 = vmul.f32 %v805, %v932
      %v944 = vmul.f32 %v806, %v932
      %v945 = vmul.f32 %v807, %v932
      %v946 = vmul.f32 %v808, %v932
      %v947 = vmul.f32 %v809, %v932
      %v948 = vmul.f32 %v810, %v932
      %v949 = vadd.f32 %v913, %v933
      %v950 = vadd.f32 %v914, %v934
      %v951 = vadd.f32 %v915, %v935
      %v952 = vadd.f32 %v916, %v936
      %v953 = vadd.f32 %v917, %v937
      %v954 = vadd.f32 %v918, %v938
      %v955 = vadd.f32 %v919, %v939
      %v956 = vadd.f32 %v920, %v940
      %v957 = vadd.f32 %v921, %v941
      %v958 = vadd.f32 %v922, %v942
      %v959 = vadd.f32 %v923, %v943
      %v960 = vadd.f32 %v924, %v944
      %v961 = vadd.f32 %v925, %v945
      %v962 = vadd.f32 %v926, %v946
      %v963 = vadd.f32 %v927, %v947
      %v964 = vadd.f32 %v928, %v948
      %vm965 = vcmask 31744
      %966 = vst.msk [vmem:[#allocation2] sm:$0xff] %vm965, %v949
      %967 = vst.msk [vmem:[#allocation2 + $0x8] sm:$0xff] %vm965, %v950
      %968 = vst.msk [vmem:[#allocation2 + $0x10] sm:$0xff] %vm965, %v951
      %969 = vst.msk [vmem:[#allocation2 + $0x18] sm:$0xff] %vm965, %v952
      %970 = vst.msk [vmem:[#allocation2 + $0x20] sm:$0xff] %vm965, %v953
      %971 = vst.msk [vmem:[#allocation2 + $0x28] sm:$0xff] %vm965, %v954
      %972 = vst.msk [vmem:[#allocation2 + $0x30] sm:$0xff] %vm965, %v955
      %973 = vst.msk [vmem:[#allocation2 + $0x38] sm:$0xff] %vm965, %v956
      %974 = vst.msk [vmem:[#allocation2 + $0x40] sm:$0xff] %vm965, %v957
      %975 = vst.msk [vmem:[#allocation2 + $0x48] sm:$0xff] %vm965, %v958
      %976 = vst.msk [vmem:[#allocation2 + $0x50] sm:$0xff] %vm965, %v959
      %977 = vst.msk [vmem:[#allocation2 + $0x58] sm:$0xff] %vm965, %v960
      %978 = vst.msk [vmem:[#allocation2 + $0x60] sm:$0xff] %vm965, %v961
      %979 = vst.msk [vmem:[#allocation2 + $0x68] sm:$0xff] %vm965, %v962
      %980 = vst.msk [vmem:[#allocation2 + $0x70] sm:$0xff] %vm965, %v963
      %981 = vst.msk [vmem:[#allocation2 + $0x78] sm:$0xff] %vm965, %v964
      %v982 = vld [vmem:[#allocation2] sm:$0xff]
      %v983 = vld [vmem:[#allocation2 + $0x8] sm:$0xff]
      %v984 = vlaneseq
      %v985 = vshrl.u32 %v984, 7
      %v986 = vsub.s32 0, %v985
      %v987 = vrot.slane %v419, %v986
      %v988 = vmul.f32 %v831, %v987
      %v989 = vmul.f32 %v832, %v987
      %v990 = vlaneseq
      %v991 = vshrl.u32 %v990, 7
      %v992 = vsub.s32 1, %v991
      %v993 = vrot.slane %v419, %v992
      %v994 = vmul.f32 %v817, %v993
      %v995 = vmul.f32 %v818, %v993
      %v996 = vadd.f32 %v988, %v994
      %v997 = vadd.f32 %v989, %v995
      %v998 = vlaneseq
      %v999 = vshrl.u32 %v998, 7
      %v1000 = vsub.s32 2, %v999
      %v1001 = vrot.slane %v419, %v1000
      %v1002 = vmul.f32 %v837, %v1001
      %v1003 = vmul.f32 %v838, %v1001
      %v1004 = vadd.f32 %v996, %v1002
      %v1005 = vadd.f32 %v997, %v1003
      %v1006 = vadd.f32 %v982, %v1004
      %v1007 = vadd.f32 %v983, %v1005
      %1008 = vst.msk [vmem:[#allocation2] sm:$0xff] %vm965, %v1006
      %1009 = vst.msk [vmem:[#allocation2 + $0x8] sm:$0xff] %vm965, %v1007
      %v1010 = vld [vmem:[#allocation2 + $0x10] sm:$0xff]
      %v1011 = vld [vmem:[#allocation2 + $0x18] sm:$0xff]
      %v1012 = vld [vmem:[#allocation2 + $0x20] sm:$0xff]
      %v1013 = vld [vmem:[#allocation2 + $0x28] sm:$0xff]
      %v1014 = vld [vmem:[#allocation2 + $0x30] sm:$0xff]
      %v1015 = vld [vmem:[#allocation2 + $0x38] sm:$0xff]
      %v1016 = vld [vmem:[#allocation2 + $0x40] sm:$0xff]
      %v1017 = vld [vmem:[#allocation2 + $0x48] sm:$0xff]
      %v1018 = vld [vmem:[#allocation2 + $0x50] sm:$0xff]
      %v1019 = vld [vmem:[#allocation2 + $0x58] sm:$0xff]
      %v1020 = vld [vmem:[#allocation2 + $0x60] sm:$0xff]
      %v1021 = vld [vmem:[#allocation2 + $0x68] sm:$0xff]
      %v1022 = vld [vmem:[#allocation2 + $0x70] sm:$0xff]
      %v1023 = vld [vmem:[#allocation2 + $0x78] sm:$0xff]
      %v1024 = vmul.f32 %v666, %v987
      %v1025 = vmul.f32 %v667, %v987
      %v1026 = vmul.f32 %v668, %v987
      %v1027 = vmul.f32 %v669, %v987
      %v1028 = vmul.f32 %v670, %v987
      %v1029 = vmul.f32 %v671, %v987
      %v1030 = vmul.f32 %v672, %v987
      %v1031 = vmul.f32 %v673, %v987
      %v1032 = vmul.f32 %v674, %v987
      %v1033 = vmul.f32 %v675, %v987
      %v1034 = vmul.f32 %v676, %v987
      %v1035 = vmul.f32 %v677, %v987
      %v1036 = vmul.f32 %v678, %v987
      %v1037 = vmul.f32 %v679, %v987
      %v1038 = vmul.f32 %v535, %v993
      %v1039 = vmul.f32 %v536, %v993
      %v1040 = vmul.f32 %v537, %v993
      %v1041 = vmul.f32 %v538, %v993
      %v1042 = vmul.f32 %v539, %v993
      %v1043 = vmul.f32 %v540, %v993
      %v1044 = vmul.f32 %v541, %v993
      %v1045 = vmul.f32 %v542, %v993
      %v1046 = vmul.f32 %v543, %v993
      %v1047 = vmul.f32 %v544, %v993
      %v1048 = vmul.f32 %v545, %v993
      %v1049 = vmul.f32 %v546, %v993
      %v1050 = vmul.f32 %v547, %v993
      %v1051 = vmul.f32 %v548, %v993
      %v1052 = vadd.f32 %v1024, %v1038
      %v1053 = vadd.f32 %v1025, %v1039
      %v1054 = vadd.f32 %v1026, %v1040
      %v1055 = vadd.f32 %v1027, %v1041
      %v1056 = vadd.f32 %v1028, %v1042
      %v1057 = vadd.f32 %v1029, %v1043
      %v1058 = vadd.f32 %v1030, %v1044
      %v1059 = vadd.f32 %v1031, %v1045
      %v1060 = vadd.f32 %v1032, %v1046
      %v1061 = vadd.f32 %v1033, %v1047
      %v1062 = vadd.f32 %v1034, %v1048
      %v1063 = vadd.f32 %v1035, %v1049
      %v1064 = vadd.f32 %v1036, %v1050
      %v1065 = vadd.f32 %v1037, %v1051
      %v1066 = vmul.f32 %v795, %v1001
      %v1067 = vmul.f32 %v796, %v1001
      %v1068 = vmul.f32 %v797, %v1001
      %v1069 = vmul.f32 %v798, %v1001
      %v1070 = vmul.f32 %v799, %v1001
      %v1071 = vmul.f32 %v800, %v1001
      %v1072 = vmul.f32 %v801, %v1001
      %v1073 = vmul.f32 %v802, %v1001
      %v1074 = vmul.f32 %v803, %v1001
      %v1075 = vmul.f32 %v804, %v1001
      %v1076 = vmul.f32 %v805, %v1001
      %v1077 = vmul.f32 %v806, %v1001
      %v1078 = vmul.f32 %v807, %v1001
      %v1079 = vmul.f32 %v808, %v1001
      %v1080 = vadd.f32 %v1052, %v1066
      %v1081 = vadd.f32 %v1053, %v1067
      %v1082 = vadd.f32 %v1054, %v1068
      %v1083 = vadd.f32 %v1055, %v1069
      %v1084 = vadd.f32 %v1056, %v1070
      %v1085 = vadd.f32 %v1057, %v1071
      %v1086 = vadd.f32 %v1058, %v1072
      %v1087 = vadd.f32 %v1059, %v1073
      %v1088 = vadd.f32 %v1060, %v1074
      %v1089 = vadd.f32 %v1061, %v1075
      %v1090 = vadd.f32 %v1062, %v1076
      %v1091 = vadd.f32 %v1063, %v1077
      %v1092 = vadd.f32 %v1064, %v1078
      %v1093 = vadd.f32 %v1065, %v1079
      %v1094 = vadd.f32 %v1010, %v1080
      %v1095 = vadd.f32 %v1011, %v1081
      %v1096 = vadd.f32 %v1012, %v1082
      %v1097 = vadd.f32 %v1013, %v1083
      %v1098 = vadd.f32 %v1014, %v1084
      %v1099 = vadd.f32 %v1015, %v1085
      %v1100 = vadd.f32 %v1016, %v1086
      %v1101 = vadd.f32 %v1017, %v1087
      %v1102 = vadd.f32 %v1018, %v1088
      %v1103 = vadd.f32 %v1019, %v1089
      %v1104 = vadd.f32 %v1020, %v1090
      %v1105 = vadd.f32 %v1021, %v1091
      %v1106 = vadd.f32 %v1022, %v1092
      %v1107 = vadd.f32 %v1023, %v1093
      %1108 = vst.msk [vmem:[#allocation2 + $0x10] sm:$0xff] %vm965, %v1094
      %1109 = vst.msk [vmem:[#allocation2 + $0x18] sm:$0xff] %vm965, %v1095
      %1110 = vst.msk [vmem:[#allocation2 + $0x20] sm:$0xff] %vm965, %v1096
      %1111 = vst.msk [vmem:[#allocation2 + $0x28] sm:$0xff] %vm965, %v1097
      %1112 = vst.msk [vmem:[#allocation2 + $0x30] sm:$0xff] %vm965, %v1098
      %1113 = vst.msk [vmem:[#allocation2 + $0x38] sm:$0xff] %vm965, %v1099
      %1114 = vst.msk [vmem:[#allocation2 + $0x40] sm:$0xff] %vm965, %v1100
      %1115 = vst.msk [vmem:[#allocation2 + $0x48] sm:$0xff] %vm965, %v1101
      %1116 = vst.msk [vmem:[#allocation2 + $0x50] sm:$0xff] %vm965, %v1102
      %1117 = vst.msk [vmem:[#allocation2 + $0x58] sm:$0xff] %vm965, %v1103
      %1118 = vst.msk [vmem:[#allocation2 + $0x60] sm:$0xff] %vm965, %v1104
      %1119 = vst.msk [vmem:[#allocation2 + $0x68] sm:$0xff] %vm965, %v1105
      %1120 = vst.msk [vmem:[#allocation2 + $0x70] sm:$0xff] %vm965, %v1106
      %1121 = vst.msk [vmem:[#allocation2 + $0x78] sm:$0xff] %vm965, %v1107
      %v1122 = vld [vmem:[#allocation2] sm:$0xff]
      %v1123 = vld [vmem:[#allocation2 + $0x8] sm:$0xff]
      %v1124 = vld [vmem:[#allocation2 + $0x10] sm:$0xff]
      %v1125 = vld [vmem:[#allocation2 + $0x18] sm:$0xff]
      %v1126 = vld [vmem:[#allocation2 + $0x20] sm:$0xff]
      %v1127 = vld [vmem:[#allocation2 + $0x28] sm:$0xff]
      %v1128 = vld [vmem:[#allocation2 + $0x30] sm:$0xff]
      %v1129 = vld [vmem:[#allocation2 + $0x38] sm:$0xff]
      %v1130 = vld [vmem:[#allocation2 + $0x40] sm:$0xff]
      %v1131 = vld [vmem:[#allocation2 + $0x48] sm:$0xff]
      %v1132 = vld [vmem:[#allocation2 + $0x50] sm:$0xff]
      %v1133 = vld [vmem:[#allocation2 + $0x58] sm:$0xff]
      %v1134 = vld [vmem:[#allocation2 + $0x60] sm:$0xff]
      %v1135 = vld [vmem:[#allocation2 + $0x68] sm:$0xff]
      %v1136 = vlaneseq
      %v1137 = vshrl.u32 %v1136, 7
      %v1138 = vsub.s32 0, %v1137
      %v1139 = vrot.slane %v421, %v1138
      %v1140 = vmul.f32 %v668, %v1139
      %v1141 = vmul.f32 %v669, %v1139
      %v1142 = vmul.f32 %v670, %v1139
      %v1143 = vmul.f32 %v671, %v1139
      %v1144 = vmul.f32 %v672, %v1139
      %v1145 = vmul.f32 %v673, %v1139
      %v1146 = vmul.f32 %v674, %v1139
      %v1147 = vmul.f32 %v675, %v1139
      %v1148 = vmul.f32 %v676, %v1139
      %v1149 = vmul.f32 %v677, %v1139
      %v1150 = vmul.f32 %v678, %v1139
      %v1151 = vmul.f32 %v679, %v1139
      %v1152 = vmul.f32 %v680, %v1139
      %v1153 = vmul.f32 %v681, %v1139
      %v1154 = vlaneseq
      %v1155 = vshrl.u32 %v1154, 7
      %v1156 = vsub.s32 1, %v1155
      %v1157 = vrot.slane %v421, %v1156
      %v1158 = vmul.f32 %v537, %v1157
      %v1159 = vmul.f32 %v538, %v1157
      %v1160 = vmul.f32 %v539, %v1157
      %v1161 = vmul.f32 %v540, %v1157
      %v1162 = vmul.f32 %v541, %v1157
      %v1163 = vmul.f32 %v542, %v1157
      %v1164 = vmul.f32 %v543, %v1157
      %v1165 = vmul.f32 %v544, %v1157
      %v1166 = vmul.f32 %v545, %v1157
      %v1167 = vmul.f32 %v546, %v1157
      %v1168 = vmul.f32 %v547, %v1157
      %v1169 = vmul.f32 %v548, %v1157
      %v1170 = vmul.f32 %v549, %v1157
      %v1171 = vmul.f32 %v550, %v1157
      %v1172 = vadd.f32 %v1140, %v1158
      %v1173 = vadd.f32 %v1141, %v1159
      %v1174 = vadd.f32 %v1142, %v1160
      %v1175 = vadd.f32 %v1143, %v1161
      %v1176 = vadd.f32 %v1144, %v1162
      %v1177 = vadd.f32 %v1145, %v1163
      %v1178 = vadd.f32 %v1146, %v1164
      %v1179 = vadd.f32 %v1147, %v1165
      %v1180 = vadd.f32 %v1148, %v1166
      %v1181 = vadd.f32 %v1149, %v1167
      %v1182 = vadd.f32 %v1150, %v1168
      %v1183 = vadd.f32 %v1151, %v1169
      %v1184 = vadd.f32 %v1152, %v1170
      %v1185 = vadd.f32 %v1153, %v1171
      %v1186 = vlaneseq
      %v1187 = vshrl.u32 %v1186, 7
      %v1188 = vsub.s32 2, %v1187
      %v1189 = vrot.slane %v421, %v1188
      %v1190 = vmul.f32 %v797, %v1189
      %v1191 = vmul.f32 %v798, %v1189
      %v1192 = vmul.f32 %v799, %v1189
      %v1193 = vmul.f32 %v800, %v1189
      %v1194 = vmul.f32 %v801, %v1189
      %v1195 = vmul.f32 %v802, %v1189
      %v1196 = vmul.f32 %v803, %v1189
      %v1197 = vmul.f32 %v804, %v1189
      %v1198 = vmul.f32 %v805, %v1189
      %v1199 = vmul.f32 %v806, %v1189
      %v1200 = vmul.f32 %v807, %v1189
      %v1201 = vmul.f32 %v808, %v1189
      %v1202 = vmul.f32 %v809, %v1189
      %v1203 = vmul.f32 %v810, %v1189
      %v1204 = vadd.f32 %v1172, %v1190
      %v1205 = vadd.f32 %v1173, %v1191
      %v1206 = vadd.f32 %v1174, %v1192
      %v1207 = vadd.f32 %v1175, %v1193
      %v1208 = vadd.f32 %v1176, %v1194
      %v1209 = vadd.f32 %v1177, %v1195
      %v1210 = vadd.f32 %v1178, %v1196
      %v1211 = vadd.f32 %v1179, %v1197
      %v1212 = vadd.f32 %v1180, %v1198
      %v1213 = vadd.f32 %v1181, %v1199
      %v1214 = vadd.f32 %v1182, %v1200
      %v1215 = vadd.f32 %v1183, %v1201
      %v1216 = vadd.f32 %v1184, %v1202
      %v1217 = vadd.f32 %v1185, %v1203
      %v1218 = vadd.f32 %v1122, %v1204
      %v1219 = vadd.f32 %v1123, %v1205
      %v1220 = vadd.f32 %v1124, %v1206
      %v1221 = vadd.f32 %v1125, %v1207
      %v1222 = vadd.f32 %v1126, %v1208
      %v1223 = vadd.f32 %v1127, %v1209
      %v1224 = vadd.f32 %v1128, %v1210
      %v1225 = vadd.f32 %v1129, %v1211
      %v1226 = vadd.f32 %v1130, %v1212
      %v1227 = vadd.f32 %v1131, %v1213
      %v1228 = vadd.f32 %v1132, %v1214
      %v1229 = vadd.f32 %v1133, %v1215
      %v1230 = vadd.f32 %v1134, %v1216
      %v1231 = vadd.f32 %v1135, %v1217
      %1232 = vst.msk [vmem:[#allocation2] sm:$0xff] %vm965, %v1218
      %1233 = vst.msk [vmem:[#allocation2 + $0x8] sm:$0xff] %vm965, %v1219
      %1234 = vst.msk [vmem:[#allocation2 + $0x10] sm:$0xff] %vm965, %v1220
      %1235 = vst.msk [vmem:[#allocation2 + $0x18] sm:$0xff] %vm965, %v1221
      %1236 = vst.msk [vmem:[#allocation2 + $0x20] sm:$0xff] %vm965, %v1222
      %1237 = vst.msk [vmem:[#allocation2 + $0x28] sm:$0xff] %vm965, %v1223
      %1238 = vst.msk [vmem:[#allocation2 + $0x30] sm:$0xff] %vm965, %v1224
      %1239 = vst.msk [vmem:[#allocation2 + $0x38] sm:$0xff] %vm965, %v1225
      %1240 = vst.msk [vmem:[#allocation2 + $0x40] sm:$0xff] %vm965, %v1226
      %1241 = vst.msk [vmem:[#allocation2 + $0x48] sm:$0xff] %vm965, %v1227
      %1242 = vst.msk [vmem:[#allocation2 + $0x50] sm:$0xff] %vm965, %v1228
      %1243 = vst.msk [vmem:[#allocation2 + $0x58] sm:$0xff] %vm965, %v1229
      %1244 = vst.msk [vmem:[#allocation2 + $0x60] sm:$0xff] %vm965, %v1230
      %1245 = vst.msk [vmem:[#allocation2 + $0x68] sm:$0xff] %vm965, %v1231
      %v1246 = vld [vmem:[#allocation2 + $0x70] sm:$0xff]
      %v1247 = vld [vmem:[#allocation2 + $0x78] sm:$0xff]
      %v1248 = vmul.f32 %v843, %v1139
      %v1249 = vmul.f32 %v844, %v1139
      %v1250 = vmul.f32 %v825, %v1157
      %v1251 = vmul.f32 %v826, %v1157
      %v1252 = vadd.f32 %v1248, %v1250
      %v1253 = vadd.f32 %v1249, %v1251
      %v1254 = vmul.f32 %v849, %v1189
      %v1255 = vmul.f32 %v850, %v1189
      %v1256 = vadd.f32 %v1252, %v1254
      %v1257 = vadd.f32 %v1253, %v1255
      %v1258 = vadd.f32 %v1246, %v1256
      %v1259 = vadd.f32 %v1247, %v1257
      %1260 = vst.msk [vmem:[#allocation2 + $0x70] sm:$0xff] %vm965, %v1258
      %1261 = vst.msk [vmem:[#allocation2 + $0x78] sm:$0xff] %vm965, %v1259
      %v1262 = vld [vmem:[#allocation2] sm:$0xff]
      %v1263 = vld [vmem:[#allocation2 + $0x8] sm:$0xff]
      %v1264 = vld [vmem:[#allocation2 + $0x10] sm:$0xff]
      %v1265 = vld [vmem:[#allocation2 + $0x18] sm:$0xff]
      %v1266 = vld [vmem:[#allocation2 + $0x20] sm:$0xff]
      %v1267 = vld [vmem:[#allocation2 + $0x28] sm:$0xff]
      %v1268 = vld [vmem:[#allocation2 + $0x30] sm:$0xff]
      %v1269 = vld [vmem:[#allocation2 + $0x38] sm:$0xff]
      %v1270 = vld [vmem:[#allocation2 + $0x40] sm:$0xff]
      %v1271 = vld [vmem:[#allocation2 + $0x48] sm:$0xff]
      %v1272 = vld [vmem:[#allocation2 + $0x50] sm:$0xff]
      %v1273 = vld [vmem:[#allocation2 + $0x58] sm:$0xff]
      %v1274 = vld [vmem:[#allocation2 + $0x60] sm:$0xff]
      %v1275 = vld [vmem:[#allocation2 + $0x68] sm:$0xff]
      %v1276 = vld [vmem:[#allocation2 + $0x70] sm:$0xff]
      %v1277 = vld [vmem:[#allocation2 + $0x78] sm:$0xff]
      %1278 = vst.msk [vmem:[%s417] sm:$0xff] %vm965, %v1262
      %1279 = vst.msk [vmem:[%s417 + $0x8] sm:$0xff] %vm965, %v1263
      %1280 = vst.msk [vmem:[%s417 + $0x10] sm:$0xff] %vm965, %v1264
      %1281 = vst.msk [vmem:[%s417 + $0x18] sm:$0xff] %vm965, %v1265
      %1282 = vst.msk [vmem:[%s417 + $0x20] sm:$0xff] %vm965, %v1266
      %1283 = vst.msk [vmem:[%s417 + $0x28] sm:$0xff] %vm965, %v1267
      %1284 = vst.msk [vmem:[%s417 + $0x30] sm:$0xff] %vm965, %v1268
      %1285 = vst.msk [vmem:[%s417 + $0x38] sm:$0xff] %vm965, %v1269
      %1286 = vst.msk [vmem:[%s417 + $0x40] sm:$0xff] %vm965, %v1270
      %1287 = vst.msk [vmem:[%s417 + $0x48] sm:$0xff] %vm965, %v1271
      %1288 = vst.msk [vmem:[%s417 + $0x50] sm:$0xff] %vm965, %v1272
      %1289 = vst.msk [vmem:[%s417 + $0x58] sm:$0xff] %vm965, %v1273
      %1290 = vst.msk [vmem:[%s417 + $0x60] sm:$0xff] %vm965, %v1274
      %1291 = vst.msk [vmem:[%s417 + $0x68] sm:$0xff] %vm965, %v1275
      %1292 = vst.msk [vmem:[%s417 + $0x70] sm:$0xff] %vm965, %v1276
      %1293 = vst.msk [vmem:[%s417 + $0x78] sm:$0xff] %vm965, %v1277
      %s1294 = smul.u32 16, %s22
      %p1295 = scmp.lt.s32.totalorder %s21, 1
      %s1296 = scalar_select %p1295, %s21, 1
      %p1297 = scmp.lt.s32.totalorder %s1294, 31
      %s1298 = scalar_select %p1297, %s1294, 31
      %s1299 = smul.addr %s1296, 32
      %s1300 = sadd.s32 %s1298, %s1299
      %s1301 = smul.addr %s1300, 8
      %s1302 = scalar_lea.vmem %s6, %s1301
      // Predicated region
      $region45: #{tpu_custom_call.1} parent=43 // pred_check
        %p1303 = pneg %p212
      $region46: #{tpu_custom_call.1} parent=43 // pred_check_branch
        %1305 = sbr.rel (%p1303) target = $region48
      $region47: #{tpu_custom_call.1} parent=43 // pred_region
        %s1306 = smul.u32 16, %s22
      $region48: #{tpu_custom_call.1} parent=43 // pred_fallthru
        _
    $region44: #{tpu_custom_call.1} parent=5 // pred_fallthru
      _
    %p1307 = scmp.le.s32.totalorder 2, %s12
    // Predicated region
    $region49: #{tpu_custom_call.1} parent=5 // pred_check
      %p1308 = pneg %p1307
    $region50: #{tpu_custom_call.1} parent=5 // pred_check_branch
      %1310 = sbr.rel (%p1308) target = $region52
    $region51: #{tpu_custom_call.1} parent=5 // pred_region
      %s1311 = ssub.s32 %s12, 2
      // Predicated region
      $region53: #{tpu_custom_call.1} parent=51 // pred_check
        %p1312 = pneg %p218
      $region54: #{tpu_custom_call.1} parent=51 // pred_check_branch
        %1314 = sbr.rel (%p1312) target = $region56
      $region55: #{tpu_custom_call.1} parent=51 // pred_region
        %s1315 = smul.u32 16, %s24
        %p1316 = scmp.lt.s32.totalorder %s23, 1
        %s1317 = scalar_select %p1316, %s23, 1
        %p1318 = scmp.lt.s32.totalorder %s1315, 31
        %s1319 = scalar_select %p1318, %s1315, 31
        %s1320 = smul.addr %s1317, 32
        %s1321 = sadd.s32 %s1319, %s1320
        %s1322 = smul.addr %s1321, 8
        %s1323 = scalar_lea.vmem %s6, %s1322
      $region56: #{tpu_custom_call.1} parent=51 // pred_fallthru
        _
    $region52: #{tpu_custom_call.1} parent=5 // pred_fallthru
      _
  $region6: #{tpu_custom_call.1} parent=0 // loop_footer
    %s16 = sadd.s32 1, %s12
  $region7: #{tpu_custom_call.1} parent=0 // loop_footer_branch
    %11 = sbr.rel target = $region3
  $region8: #{tpu_custom_call.1} parent=0 // loop_exit
    _

</llo_original>
